<compile_context>
chip_gen: v6e
topology: v6e:2x2x1
jax: 0.10.0
libtpu: 0.0.40
codegen_flags: <defaults>
</compile_context>

<pallas_src>
import functools

import jax
import jax.numpy as jnp
from jax import lax
from jax.experimental import pallas as pl
from jax.experimental.pallas import tpu as pltpu


def _gelu_erf(x):
    """Exact-erf GELU via A&S 7.1.26 polynomial (|erf err| <= 1.5e-7)."""
    z = x * 0.7071067811865476
    za = jnp.abs(z)
    t = 1.0 / (1.0 + 0.3275911 * za)
    poly = ((((1.061405429 * t - 1.453152027) * t + 1.421413741) * t
             - 0.284496736) * t + 0.254829592) * t
    erf_abs = 1.0 - poly * jnp.exp(-za * za)
    erf = jnp.where(z < 0.0, -erf_abs, erf_abs)
    return 0.5 * x * (1.0 + erf)


def _dwconv3x3_packed(img, w_ref, s0, s1, C, mask_l=None, mask_r=None):
    """Depthwise 3x3 'SAME' conv on a lane-packed (M, L) float32 image.

    img   : (M, L) f32, element (row, w*C + c) (rows = Bt*H, batch-folded).
    w_ref : (9, L) f32 ref; row ky*3+kx holds the per-channel tap weight tiled
            along lanes in the same packing as `img`.
    s0/s1 : (M, M) f32 0/1 row-shift matrices for dy=-1 / dy=+1 (block-diagonal
            per batch element so shifts never cross batch boundaries).
    C     : lane shift per dx step (channels per pixel group).
    mask_l/mask_r : optional (1, L) 0/1 masks zeroing boundary pixel groups of
            the dx=-1 / dx=+1 shifted images (needed for the deinterleaved
            GDFN layout where two half-images share the lane axis).
    """
    f32 = jnp.float32
    M, L = img.shape
    zc = jnp.zeros((M, C), f32)
    shift_l = jnp.concatenate([zc, img[:, :L - C]], axis=1)   # tap[l] = img[l-C]  (dx=-1)
    shift_r = jnp.concatenate([img[:, C:], zc], axis=1)       # tap[l] = img[l+C]  (dx=+1)
    if mask_l is not None:
        shift_l = shift_l * mask_l
    if mask_r is not None:
        shift_r = shift_r * mask_r

    def ky_partial(ky):
        base = 3 * ky
        p = img * w_ref[pl.ds(base + 1, 1), :]            # centre tap initialises acc
        p = p + shift_l * w_ref[pl.ds(base + 0, 1), :]
        p = p + shift_r * w_ref[pl.ds(base + 2, 1), :]
        return p

    # Only 2 row-shift matmuls per dwconv (weighting commutes with the 0/1 shift).
    return (jnp.dot(s0, ky_partial(0), preferred_element_type=f32)
            + ky_partial(1)
            + jnp.dot(s1, ky_partial(2), preferred_element_type=f32))


def lgff_kernel(x_ref, s_ref, dw1w_ref, dw1b_ref, pw1_ref, pw1b_ref, avg_ref,
                lnw_ref, gin_ref, gdw_ref, maskl_ref, maskr_ref, gout_ref,
                o_ref, *, M, W, Cin, hidden):
    f32 = jnp.float32
    half = W * hidden

    x = x_ref[...].astype(f32)                                # (M, W*Cin)
    s0 = s_ref[0]                                             # (M, M) dy=-1
    s1 = s_ref[1]                                             # (M, M) dy=+1

    # ---- project_in[0]: depthwise 3x3 conv (+bias), groups=Cin ----
    y = _dwconv3x3_packed(x, dw1w_ref, s0, s1, Cin) + dw1b_ref[...]

    # ---- project_in[1]: 1x1 conv Cin -> Cout (block-diagonal lane matmul) ----
    v = jnp.dot(y, pw1_ref[...], preferred_element_type=f32) + pw1b_ref[...]   # (M, W*Cout)

    # ---- BiasFree LayerNorm: one fused statistics matmul ----
    # avg_ref = kron(I_W, ones(Cout,Cout)/Cout); [v ; v*v] -> [mu ; E[v^2]].
    vv = jnp.concatenate([v, v * v], axis=0)                  # (2M, W*Cout)
    stats = jnp.dot(vv, avg_ref[...], preferred_element_type=f32)
    mu = stats[:M]
    var = stats[M:] - mu * mu
    vn = v * lax.rsqrt(var + 1e-5) * lnw_ref[...]

    # ---- GDFN project_in: 1x1 Cout -> 2*hidden, deinterleaved [x1 | x2] ----
    g = jnp.dot(vn, gin_ref[...], preferred_element_type=f32)                  # (M, 2*half)

    # ---- GDFN depthwise 3x3 (masks stop bleed across the x1/x2 half boundary) ----
    h2 = _dwconv3x3_packed(g, gdw_ref, s0, s1, hidden,
                           mask_l=maskl_ref[...], mask_r=maskr_ref[...])

    # ---- gated GELU on the x1 half only (lane-aligned 128-multiple slices) ----
    gated = _gelu_erf(h2[:, :half]) * h2[:, half:]

    # ---- GDFN project_out: 1x1 hidden -> Cout (no zero rows) ----
    ffn = jnp.dot(gated, gout_ref[...], preferred_element_type=f32)            # (M, W*Cout)

    # ---- residual: v + ffn(norm(v)) ----  (lane-dense 128-wide store)
    o_ref[...] = (v + ffn).astype(o_ref.dtype)


def lgff_forward(x, dw1, dw1b, pw1, pw1b, lnw, ginw, gdw, goutw):
    """x: (B, H, W, Cin) NHWC float32.  Raw-layout parameters (see __main__)."""
    B, H, W, Cin = x.shape
    Cout = pw1.shape[1]
    hidden = goutw.shape[0]
    two_h = 2 * hidden
    half = W * hidden
    f32 = jnp.float32

    # Batch fold: largest divisor of B with Bt*H <= 256 rows (fills MXU rows;
    # 256 saturates v6e/v7x, 128 already saturates v5e).
    Bt = 1
    for cand in range(1, B + 1):
        if B % cand == 0 and cand * H <= 256:
            Bt = cand
    M = Bt * H
    num_steps = B // Bt

    eye_w = jnp.eye(W, dtype=f32)
    eye_bt = jnp.eye(Bt, dtype=f32)
    # Row-shift matrices, block-diagonal per batch element (dy never crosses batches).
    shift_mats = jnp.stack([jnp.kron(eye_bt, jnp.eye(H, k=-1, dtype=f32)),
                            jnp.kron(eye_bt, jnp.eye(H, k=1, dtype=f32))])   # (2, M, M)

    # Lane-packed / block-diagonal parameter prep (tiny; runs once under jit).
    dw1w_t = jnp.tile(dw1.reshape(9, Cin).astype(f32), (1, W))               # (9, W*Cin)
    dw1b_t = jnp.tile(dw1b.reshape(1, Cin).astype(f32), (1, W))              # (1, W*Cin)
    pw1_bd = jnp.kron(eye_w, pw1.astype(f32))                                # (W*Cin, W*Cout)
    pw1b_t = jnp.tile(pw1b.reshape(1, Cout).astype(f32), (1, W))             # (1, W*Cout)
    avg_bd = jnp.kron(eye_w, jnp.full((Cout, Cout), 1.0 / Cout, f32))        # (W*Cout, W*Cout)
    lnw_t = jnp.tile(lnw.reshape(1, Cout).astype(f32), (1, W))               # (1, W*Cout)

    # GDFN weights, deinterleaved so hidden is packed as [x1 half | x2 half].
    ginw_f = ginw.astype(f32)
    gin_de = jnp.concatenate([jnp.kron(eye_w, ginw_f[:, :hidden]),
                              jnp.kron(eye_w, ginw_f[:, hidden:])], axis=1)  # (W*Cout, 2*half)
    gdw9 = gdw.reshape(9, two_h).astype(f32)
    gdw_de = jnp.concatenate([jnp.tile(gdw9[:, :hidden], (1, W)),
                              jnp.tile(gdw9[:, hidden:], (1, W))], axis=1)   # (9, 2*half)
    gout_de = jnp.kron(eye_w, goutw.astype(f32))                             # (half, W*Cout)

    # Boundary masks: zero pixel-0 / pixel-(W-1) groups of EACH half so lane
    # shifts don't bleed between the x1 and x2 half-images.
    pix = (jnp.arange(2 * half) % half) // hidden
    mask_l = (pix != 0).astype(f32).reshape(1, 2 * half)                     # for dx=-1
    mask_r = (pix != W - 1).astype(f32).reshape(1, 2 * half)                 # for dx=+1

    x2d = x.reshape(B * H, W * Cin)     # free: NHWC memory is already (b*h, w*C+c)

    kernel = functools.partial(lgff_kernel, M=M, W=W, Cin=Cin, hidden=hidden)

    def wspec(arr):
        nd = arr.ndim
        return pl.BlockSpec(arr.shape, lambda i, nd=nd: (0,) * nd)

    out = pl.pallas_call(
        kernel,
        out_shape=jax.ShapeDtypeStruct((B * H, W * Cout), x.dtype),
        grid_spec=pltpu.PrefetchScalarGridSpec(
            num_scalar_prefetch=0,
            grid=(num_steps,),
            in_specs=[
                pl.BlockSpec((M, W * Cin), lambda i: (i, 0)),
                wspec(shift_mats),
                wspec(dw1w_t), wspec(dw1b_t),
                wspec(pw1_bd), wspec(pw1b_t),
                wspec(avg_bd), wspec(lnw_t),
                wspec(gin_de), wspec(gdw_de),
                wspec(mask_l), wspec(mask_r),
                wspec(gout_de),
            ],
            out_specs=pl.BlockSpec((M, W * Cout), lambda i: (i, 0)),
        ),
        compiler_params=pltpu.CompilerParams(
            dimension_semantics=(("parallel",) if num_steps > 1 else ("arbitrary",))),
    )(x2d, shift_mats, dw1w_t, dw1b_t, pw1_bd, pw1b_t, avg_bd, lnw_t,
      gin_de, gdw_de, mask_l, mask_r, gout_de)

    return out.reshape(B, H, W, Cout)


def lgff_reference(x, dw1, dw1b, pw1, pw1b, lnw, ginw, gdw, goutw, hidden):
    """Pure-JAX reference (lax conv + einsum) of the PyTorch forward, NHWC."""
    Cin = x.shape[-1]
    C2h = gdw.shape[-1]
    dn = ('NHWC', 'HWIO', 'NHWC')
    y = lax.conv_general_dilated(x, dw1.reshape(3, 3, 1, Cin), (1, 1), 'SAME',
                                 dimension_numbers=dn, feature_group_count=Cin)
    y = y + dw1b.reshape(1, 1, 1, Cin)
    v = jnp.einsum('bhwc,cd->bhwd', y, pw1) + pw1b.reshape(1, 1, 1, -1)
    mu = v.mean(-1, keepdims=True)
    var = ((v - mu) ** 2).mean(-1, keepdims=True)
    vn = v / jnp.sqrt(var + 1e-5) * lnw.reshape(1, 1, 1, -1)
    g = jnp.einsum('bhwc,cd->bhwd', vn, ginw)
    g = lax.conv_general_dilated(g, gdw.reshape(3, 3, 1, C2h), (1, 1), 'SAME',
                                 dimension_numbers=dn, feature_group_count=C2h)
    x1, x2 = g[..., :hidden], g[..., hidden:]
    gated = jax.nn.gelu(x1, approximate=False) * x2
    ffn = jnp.einsum('bhwc,cd->bhwd', gated, goutw)
    return v + ffn


if __name__ == "__main__":
    B, H, W = 2, 16, 16
    Cin, Cout = 4, 8
    ffn_expansion_factor = 2.0
    hidden = int(Cout * ffn_expansion_factor)   # 16 ; GDFN inner width = 2*hidden = 32

    keys = jax.random.split(jax.random.PRNGKey(0), 9)
    x = jax.random.normal(keys[0], (B, H, W, Cin), jnp.float32)

    dw1   = jax.random.normal(keys[1], (3, 3, Cin), jnp.float32) * 0.2     # depthwise 3x3 (in_dim)
    dw1b  = jax.random.normal(keys[2], (1, Cin), jnp.float32) * 0.1        # its bias
    pw1   = jax.random.normal(keys[3], (Cin, Cout), jnp.float32) * 0.2     # 1x1 in_dim->out_dim
    pw1b  = jax.random.normal(keys[4], (1, Cout), jnp.float32) * 0.1       # its bias
    lnw   = 1.0 + 0.1 * jax.random.normal(keys[5], (1, Cout), jnp.float32) # BiasFree LN weight
    ginw  = jax.random.normal(keys[6], (Cout, 2 * hidden), jnp.float32) * 0.2  # GDFN 1x1 (bias=False)
    gdw   = jax.random.normal(keys[7], (3, 3, 2 * hidden), jnp.float32) * 0.2  # GDFN depthwise 3x3
    goutw = jax.random.normal(keys[8], (hidden, Cout), jnp.float32) * 0.2      # GDFN 1x1 out

    fwd = jax.jit(lgff_forward)
    out = jax.block_until_ready(
        fwd(x, dw1, dw1b, pw1, pw1b, lnw, ginw, gdw, goutw))

    ref = lgff_reference(x, dw1, dw1b, pw1, pw1b, lnw, ginw, gdw, goutw, hidden)
    assert out.shape == (B, H, W, Cout)
    assert jnp.allclose(out, ref, atol=1e-3, rtol=1e-3), (
        float(jnp.max(jnp.abs(out - ref))))
    print("KERNEL_OK")
</pallas_src>

<mosaic_0001>
module attributes {stable_mosaic.version = 11 : i64} {
  func.func @lgff_kernel(%arg0: i32, %arg1: memref<32x64xf32, #tpu.memory_space<vmem>>, %arg2: memref<2x32x32xf32, #tpu.memory_space<vmem>>, %arg3: memref<9x64xf32, #tpu.memory_space<vmem>>, %arg4: memref<1x64xf32, #tpu.memory_space<vmem>>, %arg5: memref<64x128xf32, #tpu.memory_space<vmem>>, %arg6: memref<1x128xf32, #tpu.memory_space<vmem>>, %arg7: memref<128x128xf32, #tpu.memory_space<vmem>>, %arg8: memref<1x128xf32, #tpu.memory_space<vmem>>, %arg9: memref<128x512xf32, #tpu.memory_space<vmem>>, %arg10: memref<9x512xf32, #tpu.memory_space<vmem>>, %arg11: memref<1x512xf32, #tpu.memory_space<vmem>>, %arg12: memref<1x512xf32, #tpu.memory_space<vmem>>, %arg13: memref<256x128xf32, #tpu.memory_space<vmem>>, %arg14: memref<32x128xf32, #tpu.memory_space<vmem>>) attributes {dimension_semantics = [#tpu.dimension_semantics<arbitrary>], iteration_bounds = array<i64: 1>, scalar_prefetch = 0 : i64, scratch_operands = 0 : i64, tpu.core_type = #tpu.core_type<tc>, window_params = [{transform_indices = @transform_0, window_bounds = array<i64: 32, 64>}, {pipeline_mode = #tpu.pipeline_mode<synchronous>, transform_indices = @transform_1, window_bounds = array<i64: 2, 32, 32>}, {pipeline_mode = #tpu.pipeline_mode<synchronous>, transform_indices = @transform_2, window_bounds = array<i64: 9, 64>}, {pipeline_mode = #tpu.pipeline_mode<synchronous>, transform_indices = @transform_3, window_bounds = array<i64: 1, 64>}, {pipeline_mode = #tpu.pipeline_mode<synchronous>, transform_indices = @transform_4, window_bounds = array<i64: 64, 128>}, {pipeline_mode = #tpu.pipeline_mode<synchronous>, transform_indices = @transform_5, window_bounds = array<i64: 1, 128>}, {pipeline_mode = #tpu.pipeline_mode<synchronous>, transform_indices = @transform_6, window_bounds = array<i64: 128, 128>}, {pipeline_mode = #tpu.pipeline_mode<synchronous>, transform_indices = @transform_7, window_bounds = array<i64: 1, 128>}, {pipeline_mode = #tpu.pipeline_mode<synchronous>, transform_indices = @transform_8, window_bounds = array<i64: 128, 512>}, {pipeline_mode = #tpu.pipeline_mode<synchronous>, transform_indices = @transform_9, window_bounds = array<i64: 9, 512>}, {pipeline_mode = #tpu.pipeline_mode<synchronous>, transform_indices = @transform_10, window_bounds = array<i64: 1, 512>}, {pipeline_mode = #tpu.pipeline_mode<synchronous>, transform_indices = @transform_11, window_bounds = array<i64: 1, 512>}, {pipeline_mode = #tpu.pipeline_mode<synchronous>, transform_indices = @transform_12, window_bounds = array<i64: 256, 128>}, {transform_indices = @transform_13, window_bounds = array<i64: 32, 128>}]} {
    %c0 = arith.constant 0 : index
    %c0_0 = arith.constant 0 : index
    %0 = vector.load %arg1[%c0, %c0_0] : memref<32x64xf32, #tpu.memory_space<vmem>>, vector<32x64xf32>
    %c0_1 = arith.constant 0 : index
    %c0_2 = arith.constant 0 : index
    %c0_3 = arith.constant 0 : index
    %1 = vector.load %arg2[%c0_1, %c0_2, %c0_3] : memref<2x32x32xf32, #tpu.memory_space<vmem>>, vector<1x32x32xf32>
    %2 = vector.shape_cast %1 : vector<1x32x32xf32> to vector<32x32xf32>
    %c1 = arith.constant 1 : index
    %c0_4 = arith.constant 0 : index
    %c0_5 = arith.constant 0 : index
    %3 = vector.load %arg2[%c1, %c0_4, %c0_5] : memref<2x32x32xf32, #tpu.memory_space<vmem>>, vector<1x32x32xf32>
    %4 = vector.shape_cast %3 : vector<1x32x32xf32> to vector<32x32xf32>
    %cst = arith.constant 0.000000e+00 : f32
    %5 = vector.broadcast %cst : f32 to vector<32x4xf32>
    %6 = vector.extract_strided_slice %0 {offsets = [0, 0], sizes = [32, 60], strides = [1, 1]} : vector<32x64xf32> to vector<32x60xf32>
    %7 = tpu.concatenate %5, %6 in 1 : vector<32x4xf32>, vector<32x60xf32> -> vector<32x64xf32>
    %8 = vector.extract_strided_slice %0 {offsets = [0, 4], sizes = [32, 60], strides = [1, 1]} : vector<32x64xf32> to vector<32x60xf32>
    %9 = tpu.concatenate %8, %5 in 1 : vector<32x60xf32>, vector<32x4xf32> -> vector<32x64xf32>
    %c1_6 = arith.constant 1 : index
    %c0_7 = arith.constant 0 : index
    %10 = vector.load %arg3[%c1_6, %c0_7] : memref<9x64xf32, #tpu.memory_space<vmem>>, vector<1x64xf32>
    %11 = vector.broadcast %10 : vector<1x64xf32> to vector<32x64xf32>
    %12 = arith.mulf %0, %11 : vector<32x64xf32>
    %c0_8 = arith.constant 0 : index
    %c0_9 = arith.constant 0 : index
    %13 = vector.load %arg3[%c0_8, %c0_9] : memref<9x64xf32, #tpu.memory_space<vmem>>, vector<1x64xf32>
    %14 = vector.broadcast %13 : vector<1x64xf32> to vector<32x64xf32>
    %15 = arith.mulf %7, %14 : vector<32x64xf32>
    %16 = arith.addf %12, %15 : vector<32x64xf32>
    %c2 = arith.constant 2 : index
    %c0_10 = arith.constant 0 : index
    %17 = vector.load %arg3[%c2, %c0_10] : memref<9x64xf32, #tpu.memory_space<vmem>>, vector<1x64xf32>
    %18 = vector.broadcast %17 : vector<1x64xf32> to vector<32x64xf32>
    %19 = arith.mulf %9, %18 : vector<32x64xf32>
    %20 = arith.addf %16, %19 : vector<32x64xf32>
    %cst_11 = arith.constant dense<0.000000e+00> : vector<32x64xf32>
    %21 = tpu.matmul %2, %20, %cst_11 {dimension_numbers = #tpu.dot_dimension_numbers<[1], [0], [0], [1], [0, 0, 1, 1], [], []>} : vector<32x32xf32>, vector<32x64xf32>, vector<32x64xf32> -> vector<32x64xf32>
    %c4 = arith.constant 4 : index
    %c0_12 = arith.constant 0 : index
    %22 = vector.load %arg3[%c4, %c0_12] : memref<9x64xf32, #tpu.memory_space<vmem>>, vector<1x64xf32>
    %23 = vector.broadcast %22 : vector<1x64xf32> to vector<32x64xf32>
    %24 = arith.mulf %0, %23 : vector<32x64xf32>
    %c3 = arith.constant 3 : index
    %c0_13 = arith.constant 0 : index
    %25 = vector.load %arg3[%c3, %c0_13] : memref<9x64xf32, #tpu.memory_space<vmem>>, vector<1x64xf32>
    %26 = vector.broadcast %25 : vector<1x64xf32> to vector<32x64xf32>
    %27 = arith.mulf %7, %26 : vector<32x64xf32>
    %28 = arith.addf %24, %27 : vector<32x64xf32>
    %c5 = arith.constant 5 : index
    %c0_14 = arith.constant 0 : index
    %29 = vector.load %arg3[%c5, %c0_14] : memref<9x64xf32, #tpu.memory_space<vmem>>, vector<1x64xf32>
    %30 = vector.broadcast %29 : vector<1x64xf32> to vector<32x64xf32>
    %31 = arith.mulf %9, %30 : vector<32x64xf32>
    %32 = arith.addf %28, %31 : vector<32x64xf32>
    %33 = arith.addf %21, %32 : vector<32x64xf32>
    %c7 = arith.constant 7 : index
    %c0_15 = arith.constant 0 : index
    %34 = vector.load %arg3[%c7, %c0_15] : memref<9x64xf32, #tpu.memory_space<vmem>>, vector<1x64xf32>
    %35 = vector.broadcast %34 : vector<1x64xf32> to vector<32x64xf32>
    %36 = arith.mulf %0, %35 : vector<32x64xf32>
    %c6 = arith.constant 6 : index
    %c0_16 = arith.constant 0 : index
    %37 = vector.load %arg3[%c6, %c0_16] : memref<9x64xf32, #tpu.memory_space<vmem>>, vector<1x64xf32>
    %38 = vector.broadcast %37 : vector<1x64xf32> to vector<32x64xf32>
    %39 = arith.mulf %7, %38 : vector<32x64xf32>
    %40 = arith.addf %36, %39 : vector<32x64xf32>
    %c8 = arith.constant 8 : index
    %c0_17 = arith.constant 0 : index
    %41 = vector.load %arg3[%c8, %c0_17] : memref<9x64xf32, #tpu.memory_space<vmem>>, vector<1x64xf32>
    %42 = vector.broadcast %41 : vector<1x64xf32> to vector<32x64xf32>
    %43 = arith.mulf %9, %42 : vector<32x64xf32>
    %44 = arith.addf %40, %43 : vector<32x64xf32>
    %cst_18 = arith.constant dense<0.000000e+00> : vector<32x64xf32>
    %45 = tpu.matmul %4, %44, %cst_18 {dimension_numbers = #tpu.dot_dimension_numbers<[1], [0], [0], [1], [0, 0, 1, 1], [], []>} : vector<32x32xf32>, vector<32x64xf32>, vector<32x64xf32> -> vector<32x64xf32>
    %46 = arith.addf %33, %45 : vector<32x64xf32>
    %c0_19 = arith.constant 0 : index
    %c0_20 = arith.constant 0 : index
    %47 = vector.load %arg4[%c0_19, %c0_20] : memref<1x64xf32, #tpu.memory_space<vmem>>, vector<1x64xf32>
    %48 = vector.broadcast %47 : vector<1x64xf32> to vector<32x64xf32>
    %49 = arith.addf %46, %48 : vector<32x64xf32>
    %c0_21 = arith.constant 0 : index
    %c0_22 = arith.constant 0 : index
    %50 = vector.load %arg5[%c0_21, %c0_22] : memref<64x128xf32, #tpu.memory_space<vmem>>, vector<64x128xf32>
    %cst_23 = arith.constant dense<0.000000e+00> : vector<32x128xf32>
    %51 = tpu.matmul %49, %50, %cst_23 {dimension_numbers = #tpu.dot_dimension_numbers<[1], [0], [0], [1], [0, 0, 1, 1], [], []>} : vector<32x64xf32>, vector<64x128xf32>, vector<32x128xf32> -> vector<32x128xf32>
    %c0_24 = arith.constant 0 : index
    %c0_25 = arith.constant 0 : index
    %52 = vector.load %arg6[%c0_24, %c0_25] : memref<1x128xf32, #tpu.memory_space<vmem>>, vector<1x128xf32>
    %53 = vector.broadcast %52 : vector<1x128xf32> to vector<32x128xf32>
    %54 = arith.addf %51, %53 : vector<32x128xf32>
    %55 = arith.mulf %54, %54 : vector<32x128xf32>
    %56 = tpu.concatenate %54, %55 in 0 : vector<32x128xf32>, vector<32x128xf32> -> vector<64x128xf32>
    %c0_26 = arith.constant 0 : index
    %c0_27 = arith.constant 0 : index
    %57 = vector.load %arg7[%c0_26, %c0_27] : memref<128x128xf32, #tpu.memory_space<vmem>>, vector<128x128xf32>
    %cst_28 = arith.constant dense<0.000000e+00> : vector<64x128xf32>
    %58 = tpu.matmul %56, %57, %cst_28 {dimension_numbers = #tpu.dot_dimension_numbers<[1], [0], [0], [1], [0, 0, 1, 1], [], []>} : vector<64x128xf32>, vector<128x128xf32>, vector<64x128xf32> -> vector<64x128xf32>
    %59 = vector.extract_strided_slice %58 {offsets = [0, 0], sizes = [32, 128], strides = [1, 1]} : vector<64x128xf32> to vector<32x128xf32>
    %60 = vector.extract_strided_slice %58 {offsets = [32, 0], sizes = [32, 128], strides = [1, 1]} : vector<64x128xf32> to vector<32x128xf32>
    %61 = arith.mulf %59, %59 : vector<32x128xf32>
    %62 = arith.subf %60, %61 : vector<32x128xf32>
    %cst_29 = arith.constant 9.99999974E-6 : f32
    %63 = vector.broadcast %cst_29 : f32 to vector<32x128xf32>
    %64 = arith.addf %62, %63 : vector<32x128xf32>
    %65 = math.rsqrt %64 : vector<32x128xf32>
    %66 = arith.mulf %54, %65 : vector<32x128xf32>
    %c0_30 = arith.constant 0 : index
    %c0_31 = arith.constant 0 : index
    %67 = vector.load %arg8[%c0_30, %c0_31] : memref<1x128xf32, #tpu.memory_space<vmem>>, vector<1x128xf32>
    %68 = vector.broadcast %67 : vector<1x128xf32> to vector<32x128xf32>
    %69 = arith.mulf %66, %68 : vector<32x128xf32>
    %c0_32 = arith.constant 0 : index
    %c0_33 = arith.constant 0 : index
    %70 = vector.load %arg9[%c0_32, %c0_33] : memref<128x512xf32, #tpu.memory_space<vmem>>, vector<128x512xf32>
    %cst_34 = arith.constant dense<0.000000e+00> : vector<32x512xf32>
    %71 = tpu.matmul %69, %70, %cst_34 {dimension_numbers = #tpu.dot_dimension_numbers<[1], [0], [0], [1], [0, 0, 1, 1], [], []>} : vector<32x128xf32>, vector<128x512xf32>, vector<32x512xf32> -> vector<32x512xf32>
    %c0_35 = arith.constant 0 : index
    %c0_36 = arith.constant 0 : index
    %72 = vector.load %arg11[%c0_35, %c0_36] : memref<1x512xf32, #tpu.memory_space<vmem>>, vector<1x512xf32>
    %c0_37 = arith.constant 0 : index
    %c0_38 = arith.constant 0 : index
    %73 = vector.load %arg12[%c0_37, %c0_38] : memref<1x512xf32, #tpu.memory_space<vmem>>, vector<1x512xf32>
    %cst_39 = arith.constant 0.000000e+00 : f32
    %74 = vector.broadcast %cst_39 : f32 to vector<32x16xf32>
    %75 = vector.extract_strided_slice %71 {offsets = [0, 0], sizes = [32, 496], strides = [1, 1]} : vector<32x512xf32> to vector<32x496xf32>
    %76 = tpu.concatenate %74, %75 in 1 : vector<32x16xf32>, vector<32x496xf32> -> vector<32x512xf32>
    %77 = vector.extract_strided_slice %71 {offsets = [0, 16], sizes = [32, 496], strides = [1, 1]} : vector<32x512xf32> to vector<32x496xf32>
    %78 = tpu.concatenate %77, %74 in 1 : vector<32x496xf32>, vector<32x16xf32> -> vector<32x512xf32>
    %79 = vector.broadcast %72 : vector<1x512xf32> to vector<32x512xf32>
    %80 = arith.mulf %76, %79 : vector<32x512xf32>
    %81 = vector.broadcast %73 : vector<1x512xf32> to vector<32x512xf32>
    %82 = arith.mulf %78, %81 : vector<32x512xf32>
    %c1_40 = arith.constant 1 : index
    %c0_41 = arith.constant 0 : index
    %83 = vector.load %arg10[%c1_40, %c0_41] : memref<9x512xf32, #tpu.memory_space<vmem>>, vector<1x512xf32>
    %84 = vector.broadcast %83 : vector<1x512xf32> to vector<32x512xf32>
    %85 = arith.mulf %71, %84 : vector<32x512xf32>
    %c0_42 = arith.constant 0 : index
    %c0_43 = arith.constant 0 : index
    %86 = vector.load %arg10[%c0_42, %c0_43] : memref<9x512xf32, #tpu.memory_space<vmem>>, vector<1x512xf32>
    %87 = vector.broadcast %86 : vector<1x512xf32> to vector<32x512xf32>
    %88 = arith.mulf %80, %87 : vector<32x512xf32>
    %89 = arith.addf %85, %88 : vector<32x512xf32>
    %c2_44 = arith.constant 2 : index
    %c0_45 = arith.constant 0 : index
    %90 = vector.load %arg10[%c2_44, %c0_45] : memref<9x512xf32, #tpu.memory_space<vmem>>, vector<1x512xf32>
    %91 = vector.broadcast %90 : vector<1x512xf32> to vector<32x512xf32>
    %92 = arith.mulf %82, %91 : vector<32x512xf32>
    %93 = arith.addf %89, %92 : vector<32x512xf32>
    %cst_46 = arith.constant dense<0.000000e+00> : vector<32x512xf32>
    %94 = tpu.matmul %2, %93, %cst_46 {dimension_numbers = #tpu.dot_dimension_numbers<[1], [0], [0], [1], [0, 0, 1, 1], [], []>} : vector<32x32xf32>, vector<32x512xf32>, vector<32x512xf32> -> vector<32x512xf32>
    %c4_47 = arith.constant 4 : index
    %c0_48 = arith.constant 0 : index
    %95 = vector.load %arg10[%c4_47, %c0_48] : memref<9x512xf32, #tpu.memory_space<vmem>>, vector<1x512xf32>
    %96 = vector.broadcast %95 : vector<1x512xf32> to vector<32x512xf32>
    %97 = arith.mulf %71, %96 : vector<32x512xf32>
    %c3_49 = arith.constant 3 : index
    %c0_50 = arith.constant 0 : index
    %98 = vector.load %arg10[%c3_49, %c0_50] : memref<9x512xf32, #tpu.memory_space<vmem>>, vector<1x512xf32>
    %99 = vector.broadcast %98 : vector<1x512xf32> to vector<32x512xf32>
    %100 = arith.mulf %80, %99 : vector<32x512xf32>
    %101 = arith.addf %97, %100 : vector<32x512xf32>
    %c5_51 = arith.constant 5 : index
    %c0_52 = arith.constant 0 : index
    %102 = vector.load %arg10[%c5_51, %c0_52] : memref<9x512xf32, #tpu.memory_space<vmem>>, vector<1x512xf32>
    %103 = vector.broadcast %102 : vector<1x512xf32> to vector<32x512xf32>
    %104 = arith.mulf %82, %103 : vector<32x512xf32>
    %105 = arith.addf %101, %104 : vector<32x512xf32>
    %106 = arith.addf %94, %105 : vector<32x512xf32>
    %c7_53 = arith.constant 7 : index
    %c0_54 = arith.constant 0 : index
    %107 = vector.load %arg10[%c7_53, %c0_54] : memref<9x512xf32, #tpu.memory_space<vmem>>, vector<1x512xf32>
    %108 = vector.broadcast %107 : vector<1x512xf32> to vector<32x512xf32>
    %109 = arith.mulf %71, %108 : vector<32x512xf32>
    %c6_55 = arith.constant 6 : index
    %c0_56 = arith.constant 0 : index
    %110 = vector.load %arg10[%c6_55, %c0_56] : memref<9x512xf32, #tpu.memory_space<vmem>>, vector<1x512xf32>
    %111 = vector.broadcast %110 : vector<1x512xf32> to vector<32x512xf32>
    %112 = arith.mulf %80, %111 : vector<32x512xf32>
    %113 = arith.addf %109, %112 : vector<32x512xf32>
    %c8_57 = arith.constant 8 : index
    %c0_58 = arith.constant 0 : index
    %114 = vector.load %arg10[%c8_57, %c0_58] : memref<9x512xf32, #tpu.memory_space<vmem>>, vector<1x512xf32>
    %115 = vector.broadcast %114 : vector<1x512xf32> to vector<32x512xf32>
    %116 = arith.mulf %82, %115 : vector<32x512xf32>
    %117 = arith.addf %113, %116 : vector<32x512xf32>
    %cst_59 = arith.constant dense<0.000000e+00> : vector<32x512xf32>
    %118 = tpu.matmul %4, %117, %cst_59 {dimension_numbers = #tpu.dot_dimension_numbers<[1], [0], [0], [1], [0, 0, 1, 1], [], []>} : vector<32x32xf32>, vector<32x512xf32>, vector<32x512xf32> -> vector<32x512xf32>
    %119 = arith.addf %106, %118 : vector<32x512xf32>
    %120 = vector.extract_strided_slice %119 {offsets = [0, 0], sizes = [32, 256], strides = [1, 1]} : vector<32x512xf32> to vector<32x256xf32>
    %cst_60 = arith.constant 0.707106769 : f32
    %121 = vector.broadcast %cst_60 : f32 to vector<32x256xf32>
    %122 = arith.mulf %120, %121 : vector<32x256xf32>
    %123 = math.absf %122 : vector<32x256xf32>
    %cst_61 = arith.constant 0.327591091 : f32
    %124 = vector.broadcast %cst_61 : f32 to vector<32x256xf32>
    %125 = arith.mulf %124, %123 : vector<32x256xf32>
    %cst_62 = arith.constant 1.000000e+00 : f32
    %126 = vector.broadcast %cst_62 : f32 to vector<32x256xf32>
    %127 = arith.addf %126, %125 : vector<32x256xf32>
    %cst_63 = arith.constant 1.000000e+00 : f32
    %128 = vector.broadcast %cst_63 : f32 to vector<32x256xf32>
    %129 = arith.divf %128, %127 : vector<32x256xf32>
    %cst_64 = arith.constant 1.06140542 : f32
    %130 = vector.broadcast %cst_64 : f32 to vector<32x256xf32>
    %131 = arith.mulf %130, %129 : vector<32x256xf32>
    %cst_65 = arith.constant 1.45315206 : f32
    %132 = vector.broadcast %cst_65 : f32 to vector<32x256xf32>
    %133 = arith.subf %131, %132 : vector<32x256xf32>
    %134 = arith.mulf %133, %129 : vector<32x256xf32>
    %cst_66 = arith.constant 1.42141378 : f32
    %135 = vector.broadcast %cst_66 : f32 to vector<32x256xf32>
    %136 = arith.addf %134, %135 : vector<32x256xf32>
    %137 = arith.mulf %136, %129 : vector<32x256xf32>
    %cst_67 = arith.constant 0.284496725 : f32
    %138 = vector.broadcast %cst_67 : f32 to vector<32x256xf32>
    %139 = arith.subf %137, %138 : vector<32x256xf32>
    %140 = arith.mulf %139, %129 : vector<32x256xf32>
    %cst_68 = arith.constant 0.254829586 : f32
    %141 = vector.broadcast %cst_68 : f32 to vector<32x256xf32>
    %142 = arith.addf %140, %141 : vector<32x256xf32>
    %143 = arith.mulf %142, %129 : vector<32x256xf32>
    %cst_69 = arith.constant 0.000000e+00 : f32
    %144 = vector.broadcast %cst_69 : f32 to vector<32x256xf32>
    %145 = arith.subf %144, %123 : vector<32x256xf32>
    %146 = arith.mulf %145, %123 : vector<32x256xf32>
    %147 = math.exp %146 : vector<32x256xf32>
    %148 = arith.mulf %143, %147 : vector<32x256xf32>
    %cst_70 = arith.constant 1.000000e+00 : f32
    %149 = vector.broadcast %cst_70 : f32 to vector<32x256xf32>
    %150 = arith.subf %149, %148 : vector<32x256xf32>
    %cst_71 = arith.constant 0.000000e+00 : f32
    %151 = vector.broadcast %cst_71 : f32 to vector<32x256xf32>
    %152 = arith.cmpf olt, %122, %151 : vector<32x256xf32>
    %cst_72 = arith.constant 0.000000e+00 : f32
    %153 = vector.broadcast %cst_72 : f32 to vector<32x256xf32>
    %154 = arith.subf %153, %150 : vector<32x256xf32>
    %155 = arith.select %152, %154, %150 : vector<32x256xi1>, vector<32x256xf32>
    %cst_73 = arith.constant 5.000000e-01 : f32
    %156 = vector.broadcast %cst_73 : f32 to vector<32x256xf32>
    %157 = arith.mulf %156, %120 : vector<32x256xf32>
    %cst_74 = arith.constant 1.000000e+00 : f32
    %158 = vector.broadcast %cst_74 : f32 to vector<32x256xf32>
    %159 = arith.addf %158, %155 : vector<32x256xf32>
    %160 = arith.mulf %157, %159 : vector<32x256xf32>
    %161 = vector.extract_strided_slice %119 {offsets = [0, 256], sizes = [32, 256], strides = [1, 1]} : vector<32x512xf32> to vector<32x256xf32>
    %162 = arith.mulf %160, %161 : vector<32x256xf32>
    %c0_75 = arith.constant 0 : index
    %c0_76 = arith.constant 0 : index
    %163 = vector.load %arg13[%c0_75, %c0_76] : memref<256x128xf32, #tpu.memory_space<vmem>>, vector<256x128xf32>
    %cst_77 = arith.constant dense<0.000000e+00> : vector<32x128xf32>
    %164 = tpu.matmul %162, %163, %cst_77 {dimension_numbers = #tpu.dot_dimension_numbers<[1], [0], [0], [1], [0, 0, 1, 1], [], []>} : vector<32x256xf32>, vector<256x128xf32>, vector<32x128xf32> -> vector<32x128xf32>
    %165 = arith.addf %54, %164 : vector<32x128xf32>
    %c0_78 = arith.constant 0 : index
    %c0_79 = arith.constant 0 : index
    %166 = vector.load %arg14[%c0_78, %c0_79] : memref<32x128xf32, #tpu.memory_space<vmem>>, vector<32x128xf32>
    tpu.vector_store %arg14[%c0_78, %c0_79], %165 {strides = array<i32>} : memref<32x128xf32, #tpu.memory_space<vmem>>, vector<32x128xf32>,
    return
  }
  func.func @transform_0(%arg0: i32) -> (i32, i32) {
    %c0_i32 = arith.constant 0 : i32
    %c0_i32_0 = arith.constant 0 : i32
    return %arg0, %c0_i32 : i32, i32
  }
  func.func @transform_1(%arg0: i32) -> (i32, i32, i32) {
    %c0_i32 = arith.constant 0 : i32
    %c0_i32_0 = arith.constant 0 : i32
    %c0_i32_1 = arith.constant 0 : i32
    %c0_i32_2 = arith.constant 0 : i32
    return %c0_i32, %c0_i32_0, %c0_i32_1 : i32, i32, i32
  }
  func.func @transform_2(%arg0: i32) -> (i32, i32) {
    %c0_i32 = arith.constant 0 : i32
    %c0_i32_0 = arith.constant 0 : i32
    %c0_i32_1 = arith.constant 0 : i32
    return %c0_i32, %c0_i32_0 : i32, i32
  }
  func.func @transform_3(%arg0: i32) -> (i32, i32) {
    %c0_i32 = arith.constant 0 : i32
    %c0_i32_0 = arith.constant 0 : i32
    %c0_i32_1 = arith.constant 0 : i32
    return %c0_i32, %c0_i32_0 : i32, i32
  }
  func.func @transform_4(%arg0: i32) -> (i32, i32) {
    %c0_i32 = arith.constant 0 : i32
    %c0_i32_0 = arith.constant 0 : i32
    %c0_i32_1 = arith.constant 0 : i32
    return %c0_i32, %c0_i32_0 : i32, i32
  }
  func.func @transform_5(%arg0: i32) -> (i32, i32) {
    %c0_i32 = arith.constant 0 : i32
    %c0_i32_0 = arith.constant 0 : i32
    %c0_i32_1 = arith.constant 0 : i32
    return %c0_i32, %c0_i32_0 : i32, i32
  }
  func.func @transform_6(%arg0: i32) -> (i32, i32) {
    %c0_i32 = arith.constant 0 : i32
    %c0_i32_0 = arith.constant 0 : i32
    %c0_i32_1 = arith.constant 0 : i32
    return %c0_i32, %c0_i32_0 : i32, i32
  }
  func.func @transform_7(%arg0: i32) -> (i32, i32) {
    %c0_i32 = arith.constant 0 : i32
    %c0_i32_0 = arith.constant 0 : i32
    %c0_i32_1 = arith.constant 0 : i32
    return %c0_i32, %c0_i32_0 : i32, i32
  }
  func.func @transform_8(%arg0: i32) -> (i32, i32) {
    %c0_i32 = arith.constant 0 : i32
    %c0_i32_0 = arith.constant 0 : i32
    %c0_i32_1 = arith.constant 0 : i32
    return %c0_i32, %c0_i32_0 : i32, i32
  }
  func.func @transform_9(%arg0: i32) -> (i32, i32) {
    %c0_i32 = arith.constant 0 : i32
    %c0_i32_0 = arith.constant 0 : i32
    %c0_i32_1 = arith.constant 0 : i32
    return %c0_i32, %c0_i32_0 : i32, i32
  }
  func.func @transform_10(%arg0: i32) -> (i32, i32) {
    %c0_i32 = arith.constant 0 : i32
    %c0_i32_0 = arith.constant 0 : i32
    %c0_i32_1 = arith.constant 0 : i32
    return %c0_i32, %c0_i32_0 : i32, i32
  }
  func.func @transform_11(%arg0: i32) -> (i32, i32) {
    %c0_i32 = arith.constant 0 : i32
    %c0_i32_0 = arith.constant 0 : i32
    %c0_i32_1 = arith.constant 0 : i32
    return %c0_i32, %c0_i32_0 : i32, i32
  }
  func.func @transform_12(%arg0: i32) -> (i32, i32) {
    %c0_i32 = arith.constant 0 : i32
    %c0_i32_0 = arith.constant 0 : i32
    %c0_i32_1 = arith.constant 0 : i32
    return %c0_i32, %c0_i32_0 : i32, i32
  }
  func.func @transform_13(%arg0: i32) -> (i32, i32) {
    %c0_i32 = arith.constant 0 : i32
    %c0_i32_0 = arith.constant 0 : i32
    return %arg0, %c0_i32 : i32, i32
  }
}

</mosaic_0001>

<llo_original>
// kernel: tile.52
$region0: #{tile.52}
  %s0 = inlined_call_operand.vmem [shape: f32[9,16,16], index: 0, kind: input, shape index: {}]
  %s1 = inlined_call_operand.vmem [shape: f32[9,256], index: 1, kind: output, shape index: {}]
  %v2 = vld [vmem:[%s0] ss:$8 sm:$0xf]
  %v3 = vld [vmem:[%s0] ss:$8 sm:$0xf0]
  %vm4 = vcmask 1047556
  %v5 = vsel %vm4, %v3, %v2
  %vm6 = vcmask 130048
  %7 = vst.msk [vmem:[%s1] ss:$8 sm:$0x3] %vm6, %v5
  %s8 = scalar_lea.vmem %s1, 4294967281
  %9 = vst.msk [vmem:[%s8] ss:$8 sm:$0xc] %vm6, %v5
  %s10 = scalar_lea.vmem %s1, 4294967266
  %11 = vst.msk [vmem:[%s10] ss:$8 sm:$0x30] %vm6, %v5
  %s12 = scalar_lea.vmem %s1, 4294967251
  %13 = vst.msk [vmem:[%s12] ss:$8 sm:$0xc0] %vm6, %v5
  %s14 = scalar_lea.vmem %s0, 64
  %v15 = vld [vmem:[%s14] ss:$8 sm:$0xf]
  %s16 = scalar_lea.vmem %s0, 64
  %v17 = vld [vmem:[%s16] ss:$8 sm:$0xf0]
  %vm18 = vcmask 1047556
  %v19 = vsel %vm18, %v17, %v15
  %vm20 = vcmask 130048
  %s21 = scalar_lea.vmem %s1, 4
  %22 = vst.msk [vmem:[%s21] ss:$8 sm:$0x3] %vm20, %v19
  %s23 = scalar_lea.vmem %s1, 4294967285
  %24 = vst.msk [vmem:[%s23] ss:$8 sm:$0xc] %vm20, %v19
  %s25 = scalar_lea.vmem %s1, 4294967270
  %26 = vst.msk [vmem:[%s25] ss:$8 sm:$0x30] %vm20, %v19
  %s27 = scalar_lea.vmem %s1, 4294967255
  %28 = vst.msk [vmem:[%s27] ss:$8 sm:$0xc0] %vm20, %v19
  %s29 = scalar_lea.vmem %s0, 128
  %s30 = smov 3
  %v31 = vld [vmem:[%s29] ss:$8 sm:%s30]
  %vm32 = vcmask 130048
  %s33 = scalar_lea.vmem %s1, 16
  %34 = vst.msk [vmem:[%s33] ss:$8 sm:$0x3] %vm32, %v31
  %s35 = scalar_lea.vmem %s0, 7
  %s36 = smov 3
  %v37 = vld [vmem:[%s35] ss:$16 sm:%s36]
  %s38 = scalar_lea.vmem %s0, 7
  %s39 = smov 12
  %v40 = vld [vmem:[%s38] ss:$16 sm:%s39]
  %vm41 = vcmask 1043458
  %v42 = vsel %vm41, %v40, %v37
  %s43 = scalar_lea.vmem %s0, 7
  %s44 = smov 48
  %v45 = vld [vmem:[%s43] ss:$16 sm:%s44]
  %vm46 = vcmask 1045508
  %v47 = vsel %vm46, %v45, %v42
  %s48 = scalar_lea.vmem %s0, 7
  %s49 = smov 192
  %v50 = vld [vmem:[%s48] ss:$16 sm:%s49]
  %vm51 = vcmask 1047558
  %v52 = vsel %vm51, %v50, %v47
  %53 = vrot.lane.b32.xlu0 %v52, 112
  %v54 = vpop.permute.xlu0 %53
  %vm55 = vcmask 1048448
  %56 = vst.msk [vmem:[%s1] sm:$0xff] %vm55, %v54
  %s57 = scalar_lea.vmem %s0, 15
  %s58 = smov 3
  %v59 = vld [vmem:[%s57] ss:$16 sm:%s58]
  %s60 = scalar_lea.vmem %s0, 15
  %s61 = smov 12
  %v62 = vld [vmem:[%s60] ss:$16 sm:%s61]
  %vm63 = vcmask 1043458
  %v64 = vsel %vm63, %v62, %v59
  %s65 = scalar_lea.vmem %s0, 15
  %s66 = smov 48
  %v67 = vld [vmem:[%s65] ss:$16 sm:%s66]
  %vm68 = vcmask 1045508
  %v69 = vsel %vm68, %v67, %v64
  %s70 = scalar_lea.vmem %s0, 15
  %s71 = smov 192
  %v72 = vld [vmem:[%s70] ss:$16 sm:%s71]
  %vm73 = vcmask 1047558
  %v74 = vsel %vm73, %v72, %v69
  %75 = vrot.lane.b32.xlu0 %v74, 112
  %v76 = vpop.permute.xlu0 %75
  %vm77 = vcmask 1048448
  %s78 = scalar_lea.vmem %s1, 8
  %79 = vst.msk [vmem:[%s78] sm:$0xff] %vm77, %v76
  %s80 = scalar_lea.vmem %s0, 135
  %s81 = smov 3
  %v82 = vld [vmem:[%s80] ss:$8 sm:%s81]
  %83 = vrot.lane.b32.xlu0 %v82, 112
  %v84 = vpop.permute.xlu0 %83
  %vm85 = vcmask 1048448
  %s86 = scalar_lea.vmem %s1, 16
  %87 = vst.msk [vmem:[%s86] ss:$8 sm:$0x3] %vm85, %v84
  %s88 = scalar_lea.vmem %s0, 6
  %s89 = smov 3
  %v90 = vld [vmem:[%s88] ss:$16 sm:%s89]
  %s91 = scalar_lea.vmem %s0, 6
  %s92 = smov 12
  %v93 = vld [vmem:[%s91] ss:$16 sm:%s92]
  %vm94 = vcmask 1043458
  %v95 = vsel %vm94, %v93, %v90
  %s96 = scalar_lea.vmem %s0, 6
  %s97 = smov 48
  %v98 = vld [vmem:[%s96] ss:$16 sm:%s97]
  %vm99 = vcmask 1045508
  %v100 = vsel %vm99, %v98, %v95
  %s101 = scalar_lea.vmem %s0, 6
  %s102 = smov 192
  %v103 = vld [vmem:[%s101] ss:$16 sm:%s102]
  %vm104 = vcmask 1047558
  %v105 = vsel %vm104, %v103, %v100
  %106 = vrot.lane.b32.xlu0 %v105, 96
  %v107 = vpop.permute.xlu0 %106
  %vm108 = vcmask 917248
  %109 = vst.msk [vmem:[%s1] sm:$0xff] %vm108, %v107
  %s110 = scalar_lea.vmem %s0, 14
  %s111 = smov 3
  %v112 = vld [vmem:[%s110] ss:$16 sm:%s111]
  %s113 = scalar_lea.vmem %s0, 14
  %s114 = smov 12
  %v115 = vld [vmem:[%s113] ss:$16 sm:%s114]
  %vm116 = vcmask 1043458
  %v117 = vsel %vm116, %v115, %v112
  %s118 = scalar_lea.vmem %s0, 14
  %s119 = smov 48
  %v120 = vld [vmem:[%s118] ss:$16 sm:%s119]
  %vm121 = vcmask 1045508
  %v122 = vsel %vm121, %v120, %v117
  %s123 = scalar_lea.vmem %s0, 14
  %s124 = smov 192
  %v125 = vld [vmem:[%s123] ss:$16 sm:%s124]
  %vm126 = vcmask 1047558
  %v127 = vsel %vm126, %v125, %v122
  %128 = vrot.lane.b32.xlu0 %v127, 96
  %v129 = vpop.permute.xlu0 %128
  %vm130 = vcmask 917248
  %s131 = scalar_lea.vmem %s1, 8
  %132 = vst.msk [vmem:[%s131] sm:$0xff] %vm130, %v129
  %s133 = scalar_lea.vmem %s0, 134
  %s134 = smov 3
  %v135 = vld [vmem:[%s133] ss:$8 sm:%s134]
  %136 = vrot.lane.b32.xlu0 %v135, 96
  %v137 = vpop.permute.xlu0 %136
  %vm138 = vcmask 917248
  %s139 = scalar_lea.vmem %s1, 16
  %140 = vst.msk [vmem:[%s139] ss:$8 sm:$0x3] %vm138, %v137
  %s141 = scalar_lea.vmem %s0, 5
  %s142 = smov 3
  %v143 = vld [vmem:[%s141] ss:$16 sm:%s142]
  %s144 = scalar_lea.vmem %s0, 5
  %s145 = smov 12
  %v146 = vld [vmem:[%s144] ss:$16 sm:%s145]
  %vm147 = vcmask 1043458
  %v148 = vsel %vm147, %v146, %v143
  %s149 = scalar_lea.vmem %s0, 5
  %s150 = smov 48
  %v151 = vld [vmem:[%s149] ss:$16 sm:%s150]
  %vm152 = vcmask 1045508
  %v153 = vsel %vm152, %v151, %v148
  %s154 = scalar_lea.vmem %s0, 5
  %s155 = smov 192
  %v156 = vld [vmem:[%s154] ss:$16 sm:%s155]
  %vm157 = vcmask 1047558
  %v158 = vsel %vm157, %v156, %v153
  %159 = vrot.lane.b32.xlu0 %v158, 80
  %v160 = vpop.permute.xlu0 %159
  %vm161 = vcmask 786048
  %162 = vst.msk [vmem:[%s1] sm:$0xff] %vm161, %v160
  %s163 = scalar_lea.vmem %s0, 13
  %s164 = smov 3
  %v165 = vld [vmem:[%s163] ss:$16 sm:%s164]
  %s166 = scalar_lea.vmem %s0, 13
  %s167 = smov 12
  %v168 = vld [vmem:[%s166] ss:$16 sm:%s167]
  %vm169 = vcmask 1043458
  %v170 = vsel %vm169, %v168, %v165
  %s171 = scalar_lea.vmem %s0, 13
  %s172 = smov 48
  %v173 = vld [vmem:[%s171] ss:$16 sm:%s172]
  %vm174 = vcmask 1045508
  %v175 = vsel %vm174, %v173, %v170
  %s176 = scalar_lea.vmem %s0, 13
  %s177 = smov 192
  %v178 = vld [vmem:[%s176] ss:$16 sm:%s177]
  %vm179 = vcmask 1047558
  %v180 = vsel %vm179, %v178, %v175
  %181 = vrot.lane.b32.xlu0 %v180, 80
  %v182 = vpop.permute.xlu0 %181
  %vm183 = vcmask 786048
  %s184 = scalar_lea.vmem %s1, 8
  %185 = vst.msk [vmem:[%s184] sm:$0xff] %vm183, %v182
  %s186 = scalar_lea.vmem %s0, 133
  %s187 = smov 3
  %v188 = vld [vmem:[%s186] ss:$8 sm:%s187]
  %189 = vrot.lane.b32.xlu0 %v188, 80
  %v190 = vpop.permute.xlu0 %189
  %vm191 = vcmask 786048
  %s192 = scalar_lea.vmem %s1, 16
  %193 = vst.msk [vmem:[%s192] ss:$8 sm:$0x3] %vm191, %v190
  %s194 = scalar_lea.vmem %s0, 4
  %s195 = smov 3
  %v196 = vld [vmem:[%s194] ss:$16 sm:%s195]
  %s197 = scalar_lea.vmem %s0, 4
  %s198 = smov 12
  %v199 = vld [vmem:[%s197] ss:$16 sm:%s198]
  %vm200 = vcmask 1043458
  %v201 = vsel %vm200, %v199, %v196
  %s202 = scalar_lea.vmem %s0, 4
  %s203 = smov 48
  %v204 = vld [vmem:[%s202] ss:$16 sm:%s203]
  %vm205 = vcmask 1045508
  %v206 = vsel %vm205, %v204, %v201
  %s207 = scalar_lea.vmem %s0, 4
  %s208 = smov 192
  %v209 = vld [vmem:[%s207] ss:$16 sm:%s208]
  %vm210 = vcmask 1047558
  %v211 = vsel %vm210, %v209, %v206
  %212 = vrot.lane.b32.xlu0 %v211, 64
  %v213 = vpop.permute.xlu0 %212
  %vm214 = vcmask 654848
  %215 = vst.msk [vmem:[%s1] sm:$0xff] %vm214, %v213
  %s216 = scalar_lea.vmem %s0, 12
  %s217 = smov 3
  %v218 = vld [vmem:[%s216] ss:$16 sm:%s217]
  %s219 = scalar_lea.vmem %s0, 12
  %s220 = smov 12
  %v221 = vld [vmem:[%s219] ss:$16 sm:%s220]
  %vm222 = vcmask 1043458
  %v223 = vsel %vm222, %v221, %v218
  %s224 = scalar_lea.vmem %s0, 12
  %s225 = smov 48
  %v226 = vld [vmem:[%s224] ss:$16 sm:%s225]
  %vm227 = vcmask 1045508
  %v228 = vsel %vm227, %v226, %v223
  %s229 = scalar_lea.vmem %s0, 12
  %s230 = smov 192
  %v231 = vld [vmem:[%s229] ss:$16 sm:%s230]
  %vm232 = vcmask 1047558
  %v233 = vsel %vm232, %v231, %v228
  %234 = vrot.lane.b32.xlu0 %v233, 64
  %v235 = vpop.permute.xlu0 %234
  %vm236 = vcmask 654848
  %s237 = scalar_lea.vmem %s1, 8
  %238 = vst.msk [vmem:[%s237] sm:$0xff] %vm236, %v235
  %s239 = scalar_lea.vmem %s0, 132
  %s240 = smov 3
  %v241 = vld [vmem:[%s239] ss:$8 sm:%s240]
  %242 = vrot.lane.b32.xlu0 %v241, 64
  %v243 = vpop.permute.xlu0 %242
  %vm244 = vcmask 654848
  %s245 = scalar_lea.vmem %s1, 16
  %246 = vst.msk [vmem:[%s245] ss:$8 sm:$0x3] %vm244, %v243
  %s247 = scalar_lea.vmem %s0, 3
  %s248 = smov 3
  %v249 = vld [vmem:[%s247] ss:$16 sm:%s248]
  %s250 = scalar_lea.vmem %s0, 3
  %s251 = smov 12
  %v252 = vld [vmem:[%s250] ss:$16 sm:%s251]
  %vm253 = vcmask 1043458
  %v254 = vsel %vm253, %v252, %v249
  %s255 = scalar_lea.vmem %s0, 3
  %s256 = smov 48
  %v257 = vld [vmem:[%s255] ss:$16 sm:%s256]
  %vm258 = vcmask 1045508
  %v259 = vsel %vm258, %v257, %v254
  %s260 = scalar_lea.vmem %s0, 3
  %s261 = smov 192
  %v262 = vld [vmem:[%s260] ss:$16 sm:%s261]
  %vm263 = vcmask 1047558
  %v264 = vsel %vm263, %v262, %v259
  %265 = vrot.lane.b32.xlu0 %v264, 48
  %v266 = vpop.permute.xlu0 %265
  %vm267 = vcmask 523648
  %268 = vst.msk [vmem:[%s1] sm:$0xff] %vm267, %v266
  %s269 = scalar_lea.vmem %s0, 11
  %s270 = smov 3
  %v271 = vld [vmem:[%s269] ss:$16 sm:%s270]
  %s272 = scalar_lea.vmem %s0, 11
  %s273 = smov 12
  %v274 = vld [vmem:[%s272] ss:$16 sm:%s273]
  %vm275 = vcmask 1043458
  %v276 = vsel %vm275, %v274, %v271
  %s277 = scalar_lea.vmem %s0, 11
  %s278 = smov 48
  %v279 = vld [vmem:[%s277] ss:$16 sm:%s278]
  %vm280 = vcmask 1045508
  %v281 = vsel %vm280, %v279, %v276
  %s282 = scalar_lea.vmem %s0, 11
  %s283 = smov 192
  %v284 = vld [vmem:[%s282] ss:$16 sm:%s283]
  %vm285 = vcmask 1047558
  %v286 = vsel %vm285, %v284, %v281
  %287 = vrot.lane.b32.xlu0 %v286, 48
  %v288 = vpop.permute.xlu0 %287
  %vm289 = vcmask 523648
  %s290 = scalar_lea.vmem %s1, 8
  %291 = vst.msk [vmem:[%s290] sm:$0xff] %vm289, %v288
  %s292 = scalar_lea.vmem %s0, 131
  %s293 = smov 3
  %v294 = vld [vmem:[%s292] ss:$8 sm:%s293]
  %295 = vrot.lane.b32.xlu0 %v294, 48
  %v296 = vpop.permute.xlu0 %295
  %vm297 = vcmask 523648
  %s298 = scalar_lea.vmem %s1, 16
  %299 = vst.msk [vmem:[%s298] ss:$8 sm:$0x3] %vm297, %v296
  %s300 = scalar_lea.vmem %s0, 2
  %s301 = smov 3
  %v302 = vld [vmem:[%s300] ss:$16 sm:%s301]
  %s303 = scalar_lea.vmem %s0, 2
  %s304 = smov 12
  %v305 = vld [vmem:[%s303] ss:$16 sm:%s304]
  %vm306 = vcmask 1043458
  %v307 = vsel %vm306, %v305, %v302
  %s308 = scalar_lea.vmem %s0, 2
  %s309 = smov 48
  %v310 = vld [vmem:[%s308] ss:$16 sm:%s309]
  %vm311 = vcmask 1045508
  %v312 = vsel %vm311, %v310, %v307
  %s313 = scalar_lea.vmem %s0, 2
  %s314 = smov 192
  %v315 = vld [vmem:[%s313] ss:$16 sm:%s314]
  %vm316 = vcmask 1047558
  %v317 = vsel %vm316, %v315, %v312
  %318 = vrot.lane.b32.xlu0 %v317, 32
  %v319 = vpop.permute.xlu0 %318
  %vm320 = vcmask 392448
  %321 = vst.msk [vmem:[%s1] sm:$0xff] %vm320, %v319
  %s322 = scalar_lea.vmem %s0, 10
  %s323 = smov 3
  %v324 = vld [vmem:[%s322] ss:$16 sm:%s323]
  %s325 = scalar_lea.vmem %s0, 10
  %s326 = smov 12
  %v327 = vld [vmem:[%s325] ss:$16 sm:%s326]
  %vm328 = vcmask 1043458
  %v329 = vsel %vm328, %v327, %v324
  %s330 = scalar_lea.vmem %s0, 10
  %s331 = smov 48
  %v332 = vld [vmem:[%s330] ss:$16 sm:%s331]
  %vm333 = vcmask 1045508
  %v334 = vsel %vm333, %v332, %v329
  %s335 = scalar_lea.vmem %s0, 10
  %s336 = smov 192
  %v337 = vld [vmem:[%s335] ss:$16 sm:%s336]
  %vm338 = vcmask 1047558
  %v339 = vsel %vm338, %v337, %v334
  %340 = vrot.lane.b32.xlu0 %v339, 32
  %v341 = vpop.permute.xlu0 %340
  %vm342 = vcmask 392448
  %s343 = scalar_lea.vmem %s1, 8
  %344 = vst.msk [vmem:[%s343] sm:$0xff] %vm342, %v341
  %s345 = scalar_lea.vmem %s0, 130
  %s346 = smov 3
  %v347 = vld [vmem:[%s345] ss:$8 sm:%s346]
  %348 = vrot.lane.b32.xlu0 %v347, 32
  %v349 = vpop.permute.xlu0 %348
  %vm350 = vcmask 392448
  %s351 = scalar_lea.vmem %s1, 16
  %352 = vst.msk [vmem:[%s351] ss:$8 sm:$0x3] %vm350, %v349
  %s353 = scalar_lea.vmem %s0, 1
  %s354 = smov 3
  %v355 = vld [vmem:[%s353] ss:$16 sm:%s354]
  %s356 = scalar_lea.vmem %s0, 1
  %s357 = smov 12
  %v358 = vld [vmem:[%s356] ss:$16 sm:%s357]
  %vm359 = vcmask 1043458
  %v360 = vsel %vm359, %v358, %v355
  %s361 = scalar_lea.vmem %s0, 1
  %s362 = smov 48
  %v363 = vld [vmem:[%s361] ss:$16 sm:%s362]
  %vm364 = vcmask 1045508
  %v365 = vsel %vm364, %v363, %v360
  %s366 = scalar_lea.vmem %s0, 1
  %s367 = smov 192
  %v368 = vld [vmem:[%s366] ss:$16 sm:%s367]
  %vm369 = vcmask 1047558
  %v370 = vsel %vm369, %v368, %v365
  %371 = vrot.lane.b32.xlu0 %v370, 16
  %v372 = vpop.permute.xlu0 %371
  %vm373 = vcmask 261248
  %374 = vst.msk [vmem:[%s1] sm:$0xff] %vm373, %v372
  %s375 = scalar_lea.vmem %s0, 9
  %s376 = smov 3
  %v377 = vld [vmem:[%s375] ss:$16 sm:%s376]
  %s378 = scalar_lea.vmem %s0, 9
  %s379 = smov 12
  %v380 = vld [vmem:[%s378] ss:$16 sm:%s379]
  %vm381 = vcmask 1043458
  %v382 = vsel %vm381, %v380, %v377
  %s383 = scalar_lea.vmem %s0, 9
  %s384 = smov 48
  %v385 = vld [vmem:[%s383] ss:$16 sm:%s384]
  %vm386 = vcmask 1045508
  %v387 = vsel %vm386, %v385, %v382
  %s388 = scalar_lea.vmem %s0, 9
  %s389 = smov 192
  %v390 = vld [vmem:[%s388] ss:$16 sm:%s389]
  %vm391 = vcmask 1047558
  %v392 = vsel %vm391, %v390, %v387
  %393 = vrot.lane.b32.xlu0 %v392, 16
  %v394 = vpop.permute.xlu0 %393
  %vm395 = vcmask 261248
  %s396 = scalar_lea.vmem %s1, 8
  %397 = vst.msk [vmem:[%s396] sm:$0xff] %vm395, %v394
  %s398 = scalar_lea.vmem %s0, 129
  %s399 = smov 3
  %v400 = vld [vmem:[%s398] ss:$8 sm:%s399]
  %401 = vrot.lane.b32.xlu0 %v400, 16
  %v402 = vpop.permute.xlu0 %401
  %vm403 = vcmask 261248
  %s404 = scalar_lea.vmem %s1, 16
  %405 = vst.msk [vmem:[%s404] ss:$8 sm:$0x3] %vm403, %v402

// kernel: lgff_forward.1
$region0: #{lgff_forward.1}
  #allocation0 [shape = 'u32[]', space=smem, size = 0x4, offset = 0x4, fixed_abs, tag = 'smem constant byte address 0x4 - core index']
  #allocation1 [shape = 'u32[144,128]{1,0:T(1,128)}', space=vmem, size = 0x12000, scoped, tag = 'internal scratch']
  %s0 = inlined_call_operand.vmem [shape: f32[32,64], index: 0, kind: input, shape index: {}]
  %s1 = inlined_call_operand.vmem [shape: f32[2,32,32], index: 1, kind: input, shape index: {}]
  %s2 = inlined_call_operand.vmem [shape: f32[9,64], index: 2, kind: input, shape index: {}]
  %s3 = inlined_call_operand.vmem [shape: f32[1,64], index: 3, kind: input, shape index: {}]
  %s4 = inlined_call_operand.vmem [shape: f32[64,128], index: 4, kind: input, shape index: {}]
  %s5 = inlined_call_operand.vmem [shape: f32[1,128], index: 5, kind: input, shape index: {}]
  %s6 = inlined_call_operand.vmem [shape: f32[128,128], index: 6, kind: input, shape index: {}]
  %s7 = inlined_call_operand.vmem [shape: f32[1,128], index: 7, kind: input, shape index: {}]
  %s8 = inlined_call_operand.vmem [shape: f32[128,512], index: 8, kind: input, shape index: {}]
  %s9 = inlined_call_operand.vmem [shape: f32[9,512], index: 9, kind: input, shape index: {}]
  %s10 = inlined_call_operand.vmem [shape: f32[1,512], index: 10, kind: input, shape index: {}]
  %s11 = inlined_call_operand.vmem [shape: f32[1,512], index: 11, kind: input, shape index: {}]
  %s12 = inlined_call_operand.vmem [shape: f32[256,128], index: 12, kind: input, shape index: {}]
  %s13 = inlined_call_operand.vmem [shape: f32[32,128], index: 13, kind: output, shape index: {}]
  %s14 = sld [smem:[#allocation0]]
  $region62: #{lgff_forward.1} parent=0
    _
  %s16 = ssub.s32 1, %s14
  %s17 = scalar_select 0, %s16, %s14
  // Predicated region
  $region2: #{lgff_forward.1} parent=0 // pred_check
    _
  $region3: #{lgff_forward.1} parent=0 // pred_check_branch
    %19 = sbr.rel (0) target = $region5
  $region4: #{lgff_forward.1} parent=0 // pred_region
    _
  $region5: #{lgff_forward.1} parent=0 // pred_fallthru
    _
  // Predicated region
  $region6: #{lgff_forward.1} parent=0 // pred_check
    _
  $region7: #{lgff_forward.1} parent=0 // pred_check_branch
    %21 = sbr.rel (0) target = $region9
  $region8: #{lgff_forward.1} parent=0 // pred_region
    _
  $region9: #{lgff_forward.1} parent=0 // pred_fallthru
    _
  // Predicated region
  $region10: #{lgff_forward.1} parent=0 // pred_check
    _
  $region11: #{lgff_forward.1} parent=0 // pred_check_branch
    %23 = sbr.rel (0) target = $region13
  $region12: #{lgff_forward.1} parent=0 // pred_region
    _
  $region13: #{lgff_forward.1} parent=0 // pred_fallthru
    _
  // Predicated region
  $region14: #{lgff_forward.1} parent=0 // pred_check
    _
  $region15: #{lgff_forward.1} parent=0 // pred_check_branch
    %25 = sbr.rel (0) target = $region17
  $region16: #{lgff_forward.1} parent=0 // pred_region
    _
  $region17: #{lgff_forward.1} parent=0 // pred_fallthru
    _
  // Predicated region
  $region18: #{lgff_forward.1} parent=0 // pred_check
    _
  $region19: #{lgff_forward.1} parent=0 // pred_check_branch
    %27 = sbr.rel (0) target = $region21
  $region20: #{lgff_forward.1} parent=0 // pred_region
    _
  $region21: #{lgff_forward.1} parent=0 // pred_fallthru
    _
  // Predicated region
  $region22: #{lgff_forward.1} parent=0 // pred_check
    _
  $region23: #{lgff_forward.1} parent=0 // pred_check_branch
    %29 = sbr.rel (0) target = $region25
  $region24: #{lgff_forward.1} parent=0 // pred_region
    _
  $region25: #{lgff_forward.1} parent=0 // pred_fallthru
    _
  // Predicated region
  $region26: #{lgff_forward.1} parent=0 // pred_check
    _
  $region27: #{lgff_forward.1} parent=0 // pred_check_branch
    %31 = sbr.rel (0) target = $region29
  $region28: #{lgff_forward.1} parent=0 // pred_region
    _
  $region29: #{lgff_forward.1} parent=0 // pred_fallthru
    _
  // Predicated region
  $region30: #{lgff_forward.1} parent=0 // pred_check
    _
  $region31: #{lgff_forward.1} parent=0 // pred_check_branch
    %33 = sbr.rel (0) target = $region33
  $region32: #{lgff_forward.1} parent=0 // pred_region
    _
  $region33: #{lgff_forward.1} parent=0 // pred_fallthru
    _
  // Predicated region
  $region34: #{lgff_forward.1} parent=0 // pred_check
    _
  $region35: #{lgff_forward.1} parent=0 // pred_check_branch
    %35 = sbr.rel (0) target = $region37
  $region36: #{lgff_forward.1} parent=0 // pred_region
    _
  $region37: #{lgff_forward.1} parent=0 // pred_fallthru
    _
  // Predicated region
  $region38: #{lgff_forward.1} parent=0 // pred_check
    _
  $region39: #{lgff_forward.1} parent=0 // pred_check_branch
    %37 = sbr.rel (0) target = $region41
  $region40: #{lgff_forward.1} parent=0 // pred_region
    _
  $region41: #{lgff_forward.1} parent=0 // pred_fallthru
    _
  // Predicated region
  $region42: #{lgff_forward.1} parent=0 // pred_check
    _
  $region43: #{lgff_forward.1} parent=0 // pred_check_branch
    %39 = sbr.rel (0) target = $region45
  $region44: #{lgff_forward.1} parent=0 // pred_region
    _
  $region45: #{lgff_forward.1} parent=0 // pred_fallthru
    _
  // Predicated region
  $region46: #{lgff_forward.1} parent=0 // pred_check
    _
  $region47: #{lgff_forward.1} parent=0 // pred_check_branch
    %41 = sbr.rel (0) target = $region49
  $region48: #{lgff_forward.1} parent=0 // pred_region
    _
  $region49: #{lgff_forward.1} parent=0 // pred_fallthru
    _
  // Predicated region
  $region50: #{lgff_forward.1} parent=0 // pred_check
    _
  $region51: #{lgff_forward.1} parent=0 // pred_check_branch
    %43 = sbr.rel (0) target = $region53
  $region52: #{lgff_forward.1} parent=0 // pred_region
    _
  $region53: #{lgff_forward.1} parent=0 // pred_fallthru
    _
  %v44 = vld [vmem:[%s0] sm:$0xff]
  %v45 = vld [vmem:[%s0 + $0x8] sm:$0xff]
  %v46 = vld [vmem:[%s0 + $0x10] sm:$0xff]
  %v47 = vld [vmem:[%s0 + $0x18] sm:$0xff]
  %v48 = vld [vmem:[%s1] sm:$0xff]
  %v49 = vld [vmem:[%s1 + $0x8] sm:$0xff]
  %v50 = vld [vmem:[%s1 + $0x10] sm:$0xff]
  %v51 = vld [vmem:[%s1 + $0x18] sm:$0xff]
  %s52 = scalar_lea.vmem %s1, 32
  %v53 = vld [vmem:[%s52] sm:$0xff]
  %v54 = vld [vmem:[%s52 + $0x8] sm:$0xff]
  %v55 = vld [vmem:[%s52 + $0x10] sm:$0xff]
  %v56 = vld [vmem:[%s52 + $0x18] sm:$0xff]
  %61 = vrot.lane.b32.xlu0 %v44, 4
  %v62 = vpop.permute.xlu0 %61
  %63 = vrot.lane.b32.xlu0 %v45, 4
  %v64 = vpop.permute.xlu0 %63
  %65 = vrot.lane.b32.xlu0 %v46, 4
  %v66 = vpop.permute.xlu0 %65
  %67 = vrot.lane.b32.xlu0 %v47, 4
  %v68 = vpop.permute.xlu0 %67
  %vm73 = vcmask 31744
  %v74 = vsel %vm73, 0.0, %v62
  %v75 = vsel %vm73, 0.0, %v64
  %v76 = vsel %vm73, 0.0, %v66
  %v77 = vsel %vm73, 0.0, %v68
  %78 = vrot.lane.b32.xlu0 %v44, 124
  %v79 = vpop.permute.xlu0 %78
  %80 = vrot.lane.b32.xlu0 %v45, 124
  %v81 = vpop.permute.xlu0 %80
  %82 = vrot.lane.b32.xlu0 %v46, 124
  %v83 = vpop.permute.xlu0 %82
  %84 = vrot.lane.b32.xlu0 %v47, 124
  %v85 = vpop.permute.xlu0 %84
  %vm90 = vcmask 490496
  %v91 = vsel %vm90, %v79, 0.0
  %v92 = vsel %vm90, %v81, 0.0
  %v93 = vsel %vm90, %v83, 0.0
  %v94 = vsel %vm90, %v85, 0.0
  %v95 = vld [vmem:[%s2 + $0x1] sm:$0x1]
  %v96 = vlaneseq
  %v97 = vshrl.u32 %v96, 7
  %v98 = vsub.s32 0, %v97
  %v99 = vrot.slane %v95, %v98
  %v100 = vmul.f32 %v44, %v99
  %v101 = vmul.f32 %v45, %v99
  %v102 = vmul.f32 %v46, %v99
  %v103 = vmul.f32 %v47, %v99
  %v104 = vld [vmem:[%s2] sm:$0x1]
  %v105 = vlaneseq
  %v106 = vshrl.u32 %v105, 7
  %v107 = vsub.s32 0, %v106
  %v108 = vrot.slane %v104, %v107
  %v109 = vmul.f32 %v74, %v108
  %v110 = vmul.f32 %v75, %v108
  %v111 = vmul.f32 %v76, %v108
  %v112 = vmul.f32 %v77, %v108
  %v113 = vadd.f32 %v100, %v109
  %v114 = vadd.f32 %v101, %v110
  %v115 = vadd.f32 %v102, %v111
  %v116 = vadd.f32 %v103, %v112
  %v117 = vld [vmem:[%s2 + $0x2] sm:$0x1]
  %v118 = vlaneseq
  %v119 = vshrl.u32 %v118, 7
  %v120 = vsub.s32 0, %v119
  %v121 = vrot.slane %v117, %v120
  %v122 = vmul.f32 %v91, %v121
  %v123 = vmul.f32 %v92, %v121
  %v124 = vmul.f32 %v93, %v121
  %v125 = vmul.f32 %v94, %v121
  %v126 = vadd.f32 %v113, %v122
  %v127 = vadd.f32 %v114, %v123
  %v128 = vadd.f32 %v115, %v124
  %v129 = vadd.f32 %v116, %v125
  %v130 = vld [vmem:[%s2 + $0x4] sm:$0x1]
  %v131 = vlaneseq
  %v132 = vshrl.u32 %v131, 7
  %v133 = vsub.s32 0, %v132
  %v134 = vrot.slane %v130, %v133
  %v135 = vmul.f32 %v44, %v134
  %v136 = vmul.f32 %v45, %v134
  %v137 = vmul.f32 %v46, %v134
  %v138 = vmul.f32 %v47, %v134
  %v139 = vld [vmem:[%s2 + $0x3] sm:$0x1]
  %v140 = vlaneseq
  %v141 = vshrl.u32 %v140, 7
  %v142 = vsub.s32 0, %v141
  %v143 = vrot.slane %v139, %v142
  %v144 = vmul.f32 %v74, %v143
  %v145 = vmul.f32 %v75, %v143
  %v146 = vmul.f32 %v76, %v143
  %v147 = vmul.f32 %v77, %v143
  %v148 = vadd.f32 %v135, %v144
  %v149 = vadd.f32 %v136, %v145
  %v150 = vadd.f32 %v137, %v146
  %v151 = vadd.f32 %v138, %v147
  %v152 = vld [vmem:[%s2 + $0x5] sm:$0x1]
  %v153 = vlaneseq
  %v154 = vshrl.u32 %v153, 7
  %v155 = vsub.s32 0, %v154
  %v156 = vrot.slane %v152, %v155
  %v157 = vmul.f32 %v91, %v156
  %v158 = vmul.f32 %v92, %v156
  %v159 = vmul.f32 %v93, %v156
  %v160 = vmul.f32 %v94, %v156
  %v161 = vadd.f32 %v148, %v157
  %v162 = vadd.f32 %v149, %v158
  %v163 = vadd.f32 %v150, %v159
  %v164 = vadd.f32 %v151, %v160
  %vm165 = vcmask 261120
  %v167 = vsel %vm165, %v48, 0
  %v170 = vsel %vm165, %v49, 0
  %v173 = vsel %vm165, %v50, 0
  %v176 = vsel %vm165, %v51, 0
  %178 = vmatprep.subr.mxu0 0.0
  %179 = vmatpush1.msra.mxu0 0.0
  %180 = vmatprep.subr.mxu0 0.0
  %181 = vmatpush1.msra.mxu0 0.0
  %182 = vmatprep.subr.mxu0 0.0
  %183 = vmatpush1.msra.mxu0 0.0
  %184 = vmatprep.subr.mxu0 0.0
  %185 = vmatpush1.msra.mxu0 0.0
  %186 = vmatprep.subr.mxu0 0.0
  %187 = vmatpush1.msra.mxu0 0.0
  %188 = vmatprep.subr.mxu0 0.0
  %189 = vmatpush1.msra.mxu0 0.0
  %190 = vmatprep.subr.mxu0 0.0
  %191 = vmatpush1.msra.mxu0 0.0
  %192 = vmatprep.subr.mxu0 0.0
  %193 = vmatpush1.msra.mxu0 0.0
  %194 = vmatprep.subr.mxu0 0.0
  %195 = vmatpush1.msra.mxu0 0.0
  %196 = vmatprep.subr.mxu0 0.0
  %197 = vmatpush1.msra.mxu0 0.0
  %198 = vmatprep.subr.mxu0 0.0
  %199 = vmatpush1.msra.mxu0 0.0
  %200 = vmatprep.subr.mxu0 0.0
  %201 = vmatpush1.msra.mxu0 0.0
  %202 = vmatprep.subr.mxu0 0.0
  %203 = vmatpush1.msra.mxu0 %v129
  %204 = vmatprep.subr.mxu0 0.0
  %205 = vmatpush1.msra.mxu0 %v128
  %206 = vmatprep.subr.mxu0 0.0
  %207 = vmatpush1.msra.mxu0 %v127
  %208 = vmatprep.subr.mxu0 0.0
  %209 = vmatpush1.msra.mxu0 %v126
  %210 = vmatprep.subr.mxu0 0.0
  %211 = vmatpush2.msra.mxu0 0.0
  %212 = vmatprep.subr.mxu0 0.0
  %213 = vmatpush2.msra.mxu0 0.0
  %214 = vmatprep.subr.mxu0 0.0
  %215 = vmatpush2.msra.mxu0 0.0
  %216 = vmatprep.subr.mxu0 0.0
  %217 = vmatpush2.msra.mxu0 0.0
  %218 = vmatprep.subr.mxu0 0.0
  %219 = vmatpush2.msra.mxu0 0.0
  %220 = vmatprep.subr.mxu0 0.0
  %221 = vmatpush2.msra.mxu0 0.0
  %222 = vmatprep.subr.mxu0 0.0
  %223 = vmatpush2.msra.mxu0 0.0
  %224 = vmatprep.subr.mxu0 0.0
  %225 = vmatpush2.msra.mxu0 0.0
  %226 = vmatprep.subr.mxu0 0.0
  %227 = vmatpush2.msra.mxu0 0.0
  %228 = vmatprep.subr.mxu0 0.0
  %229 = vmatpush2.msra.mxu0 0.0
  %230 = vmatprep.subr.mxu0 0.0
  %231 = vmatpush2.msra.mxu0 0.0
  %232 = vmatprep.subr.mxu0 0.0
  %233 = vmatpush2.msra.mxu0 0.0
  %234 = vmatprep.subr.mxu0 0.0
  %235 = vmatpush2.msra.mxu0 0.0
  %236 = vmatprep.subr.mxu0 0.0
  %237 = vmatpush2.msra.mxu0 0.0
  %238 = vmatprep.subr.mxu0 0.0
  %239 = vmatpush2.msra.mxu0 0.0
  %240 = vmatprep.subr.mxu0 0.0
  %241 = vmatpush2.msra.mxu0 0.0
  %242 = vmatprep.mubr.f32.mxu0 0.0
  %243 = vmatmul.mubr.f32.gmra.mxu0 %v167
  %v244 = vpop.f32.mrf.mxu0
  %v245 = vadd.f32 %v161, %v244
  %v246 = vpop.f32.mrf.mxu0
  %247 = vmatprep.mubr.f32.mxu0 0.0
  %248 = vmatmul.mubr.f32.gmra.mxu0 %v170
  %v249 = vpop.f32.mrf.mxu0
  %v250 = vadd.f32 %v162, %v249
  %v251 = vpop.f32.mrf.mxu0
  %252 = vmatprep.mubr.f32.mxu0 0.0
  %253 = vmatmul.mubr.f32.gmra.mxu0 %v173
  %v254 = vpop.f32.mrf.mxu0
  %v255 = vadd.f32 %v163, %v254
  %v256 = vpop.f32.mrf.mxu0
  %257 = vmatprep.mubr.f32.mxu0 0.0
  %258 = vmatmul.mubr.f32.gmra.mxu0 %v176
  %v259 = vpop.f32.mrf.mxu0
  %v260 = vadd.f32 %v164, %v259
  %v261 = vpop.f32.mrf.mxu0
  %262 = vdwg.mxu0
  %v263 = vld [vmem:[%s2 + $0x7] sm:$0x1]
  %v264 = vlaneseq
  %v265 = vshrl.u32 %v264, 7
  %v266 = vsub.s32 0, %v265
  %v267 = vrot.slane %v263, %v266
  %v268 = vmul.f32 %v44, %v267
  %v269 = vmul.f32 %v45, %v267
  %v270 = vmul.f32 %v46, %v267
  %v271 = vmul.f32 %v47, %v267
  %v272 = vld [vmem:[%s2 + $0x6] sm:$0x1]
  %v273 = vlaneseq
  %v274 = vshrl.u32 %v273, 7
  %v275 = vsub.s32 0, %v274
  %v276 = vrot.slane %v272, %v275
  %v277 = vmul.f32 %v74, %v276
  %v278 = vmul.f32 %v75, %v276
  %v279 = vmul.f32 %v76, %v276
  %v280 = vmul.f32 %v77, %v276
  %v281 = vadd.f32 %v268, %v277
  %v282 = vadd.f32 %v269, %v278
  %v283 = vadd.f32 %v270, %v279
  %v284 = vadd.f32 %v271, %v280
  %v285 = vld [vmem:[%s2 + $0x8] sm:$0x1]
  %v286 = vlaneseq
  %v287 = vshrl.u32 %v286, 7
  %v288 = vsub.s32 0, %v287
  %v289 = vrot.slane %v285, %v288
  %v290 = vmul.f32 %v91, %v289
  %v291 = vmul.f32 %v92, %v289
  %v292 = vmul.f32 %v93, %v289
  %v293 = vmul.f32 %v94, %v289
  %v294 = vadd.f32 %v281, %v290
  %v295 = vadd.f32 %v282, %v291
  %v296 = vadd.f32 %v283, %v292
  %v297 = vadd.f32 %v284, %v293
  %v299 = vsel %vm165, %v53, 0
  %v302 = vsel %vm165, %v54, 0
  %v305 = vsel %vm165, %v55, 0
  %v308 = vsel %vm165, %v56, 0
  %310 = vmatprep.subr.mxu0 0.0
  %311 = vmatpush1.msra.mxu0 0.0
  %312 = vmatprep.subr.mxu0 0.0
  %313 = vmatpush1.msra.mxu0 0.0
  %314 = vmatprep.subr.mxu0 0.0
  %315 = vmatpush1.msra.mxu0 0.0
  %316 = vmatprep.subr.mxu0 0.0
  %317 = vmatpush1.msra.mxu0 0.0
  %318 = vmatprep.subr.mxu0 0.0
  %319 = vmatpush1.msra.mxu0 0.0
  %320 = vmatprep.subr.mxu0 0.0
  %321 = vmatpush1.msra.mxu0 0.0
  %322 = vmatprep.subr.mxu0 0.0
  %323 = vmatpush1.msra.mxu0 0.0
  %324 = vmatprep.subr.mxu0 0.0
  %325 = vmatpush1.msra.mxu0 0.0
  %326 = vmatprep.subr.mxu0 0.0
  %327 = vmatpush1.msra.mxu0 0.0
  %328 = vmatprep.subr.mxu0 0.0
  %329 = vmatpush1.msra.mxu0 0.0
  %330 = vmatprep.subr.mxu0 0.0
  %331 = vmatpush1.msra.mxu0 0.0
  %332 = vmatprep.subr.mxu0 0.0
  %333 = vmatpush1.msra.mxu0 0.0
  %334 = vmatprep.subr.mxu0 0.0
  %335 = vmatpush1.msra.mxu0 %v297
  %336 = vmatprep.subr.mxu0 0.0
  %337 = vmatpush1.msra.mxu0 %v296
  %338 = vmatprep.subr.mxu0 0.0
  %339 = vmatpush1.msra.mxu0 %v295
  %340 = vmatprep.subr.mxu0 0.0
  %341 = vmatpush1.msra.mxu0 %v294
  %342 = vmatprep.subr.mxu0 0.0
  %343 = vmatpush2.msra.mxu0 0.0
  %344 = vmatprep.subr.mxu0 0.0
  %345 = vmatpush2.msra.mxu0 0.0
  %346 = vmatprep.subr.mxu0 0.0
  %347 = vmatpush2.msra.mxu0 0.0
  %348 = vmatprep.subr.mxu0 0.0
  %349 = vmatpush2.msra.mxu0 0.0
  %350 = vmatprep.subr.mxu0 0.0
  %351 = vmatpush2.msra.mxu0 0.0
  %352 = vmatprep.subr.mxu0 0.0
  %353 = vmatpush2.msra.mxu0 0.0
  %354 = vmatprep.subr.mxu0 0.0
  %355 = vmatpush2.msra.mxu0 0.0
  %356 = vmatprep.subr.mxu0 0.0
  %357 = vmatpush2.msra.mxu0 0.0
  %358 = vmatprep.subr.mxu0 0.0
  %359 = vmatpush2.msra.mxu0 0.0
  %360 = vmatprep.subr.mxu0 0.0
  %361 = vmatpush2.msra.mxu0 0.0
  %362 = vmatprep.subr.mxu0 0.0
  %363 = vmatpush2.msra.mxu0 0.0
  %364 = vmatprep.subr.mxu0 0.0
  %365 = vmatpush2.msra.mxu0 0.0
  %366 = vmatprep.subr.mxu0 0.0
  %367 = vmatpush2.msra.mxu0 0.0
  %368 = vmatprep.subr.mxu0 0.0
  %369 = vmatpush2.msra.mxu0 0.0
  %370 = vmatprep.subr.mxu0 0.0
  %371 = vmatpush2.msra.mxu0 0.0
  %372 = vmatprep.subr.mxu0 0.0
  %373 = vmatpush2.msra.mxu0 0.0
  %374 = vmatprep.mubr.f32.mxu0 0.0
  %375 = vmatmul.mubr.f32.gmra.mxu0 %v299
  %v376 = vpop.f32.mrf.mxu0
  %v377 = vadd.f32 0.0, %v376
  %v378 = vpop.f32.mrf.mxu0
  %379 = vmatprep.mubr.f32.mxu0 0.0
  %380 = vmatmul.mubr.f32.gmra.mxu0 %v302
  %v381 = vpop.f32.mrf.mxu0
  %v382 = vadd.f32 0.0, %v381
  %v383 = vpop.f32.mrf.mxu0
  %384 = vmatprep.mubr.f32.mxu0 0.0
  %385 = vmatmul.mubr.f32.gmra.mxu0 %v305
  %v386 = vpop.f32.mrf.mxu0
  %v387 = vadd.f32 0.0, %v386
  %v388 = vpop.f32.mrf.mxu0
  %389 = vmatprep.mubr.f32.mxu0 0.0
  %390 = vmatmul.mubr.f32.gmra.mxu0 %v308
  %v391 = vpop.f32.mrf.mxu0
  %v392 = vadd.f32 0.0, %v391
  %v393 = vpop.f32.mrf.mxu0
  %394 = vdwg.mxu0
  %v395 = vadd.f32 %v245, %v377
  %v396 = vadd.f32 %v250, %v382
  %v397 = vadd.f32 %v255, %v387
  %v398 = vadd.f32 %v260, %v392
  %v399 = vld [vmem:[%s3] sm:$0x1]
  %v401 = vlaneseq
  %v402 = vshrl.u32 %v401, 7
  %v403 = vsub.s32 0, %v402
  %v404 = vrot.slane %v399, %v403
  %v406 = vadd.f32 %v395, %v404
  %v407 = vadd.f32 %v396, %v404
  %v408 = vadd.f32 %v397, %v404
  %v409 = vadd.f32 %v398, %v404
  %v410 = vld [vmem:[%s4] sm:$0xff]
  %v411 = vld [vmem:[%s4 + $0x8] sm:$0xff]
  %v412 = vld [vmem:[%s4 + $0x10] sm:$0xff]
  %v413 = vld [vmem:[%s4 + $0x18] sm:$0xff]
  %v414 = vld [vmem:[%s4 + $0x20] sm:$0xff]
  %v415 = vld [vmem:[%s4 + $0x28] sm:$0xff]
  %v416 = vld [vmem:[%s4 + $0x30] sm:$0xff]
  %v417 = vld [vmem:[%s4 + $0x38] sm:$0xff]
  %v418 = vld [vmem:[%s5] sm:$0x1]
  %v420 = vlaneseq
  %v421 = vshrl.u32 %v420, 7
  %v422 = vsub.s32 0, %v421
  %v423 = vrot.slane %v418, %v422
  %vm425 = vcmask 523264
  %v427 = vsel %vm425, %v406, 0
  %v430 = vsel %vm425, %v407, 0
  %v433 = vsel %vm425, %v408, 0
  %v436 = vsel %vm425, %v409, 0
  %438 = vmatprep.subr.mxu0 0.0
  %439 = vmatpush1.msra.mxu0 0.0
  %440 = vmatprep.subr.mxu0 0.0
  %441 = vmatpush1.msra.mxu0 0.0
  %442 = vmatprep.subr.mxu0 0.0
  %443 = vmatpush1.msra.mxu0 0.0
  %444 = vmatprep.subr.mxu0 0.0
  %445 = vmatpush1.msra.mxu0 0.0
  %446 = vmatprep.subr.mxu0 0.0
  %447 = vmatpush1.msra.mxu0 0.0
  %448 = vmatprep.subr.mxu0 0.0
  %449 = vmatpush1.msra.mxu0 0.0
  %450 = vmatprep.subr.mxu0 0.0
  %451 = vmatpush1.msra.mxu0 0.0
  %452 = vmatprep.subr.mxu0 0.0
  %453 = vmatpush1.msra.mxu0 0.0
  %454 = vmatprep.subr.mxu0 0.0
  %455 = vmatpush1.msra.mxu0 %v417
  %456 = vmatprep.subr.mxu0 0.0
  %457 = vmatpush1.msra.mxu0 %v416
  %458 = vmatprep.subr.mxu0 0.0
  %459 = vmatpush1.msra.mxu0 %v415
  %460 = vmatprep.subr.mxu0 0.0
  %461 = vmatpush1.msra.mxu0 %v414
  %462 = vmatprep.subr.mxu0 0.0
  %463 = vmatpush1.msra.mxu0 %v413
  %464 = vmatprep.subr.mxu0 0.0
  %465 = vmatpush1.msra.mxu0 %v412
  %466 = vmatprep.subr.mxu0 0.0
  %467 = vmatpush1.msra.mxu0 %v411
  %468 = vmatprep.subr.mxu0 0.0
  %469 = vmatpush1.msra.mxu0 %v410
  %470 = vmatprep.subr.mxu0 0.0
  %471 = vmatpush2.msra.mxu0 0.0
  %472 = vmatprep.subr.mxu0 0.0
  %473 = vmatpush2.msra.mxu0 0.0
  %474 = vmatprep.subr.mxu0 0.0
  %475 = vmatpush2.msra.mxu0 0.0
  %476 = vmatprep.subr.mxu0 0.0
  %477 = vmatpush2.msra.mxu0 0.0
  %478 = vmatprep.subr.mxu0 0.0
  %479 = vmatpush2.msra.mxu0 0.0
  %480 = vmatprep.subr.mxu0 0.0
  %481 = vmatpush2.msra.mxu0 0.0
  %482 = vmatprep.subr.mxu0 0.0
  %483 = vmatpush2.msra.mxu0 0.0
  %484 = vmatprep.subr.mxu0 0.0
  %485 = vmatpush2.msra.mxu0 0.0
  %486 = vmatprep.subr.mxu0 0.0
  %487 = vmatpush2.msra.mxu0 0.0
  %488 = vmatprep.subr.mxu0 0.0
  %489 = vmatpush2.msra.mxu0 0.0
  %490 = vmatprep.subr.mxu0 0.0
  %491 = vmatpush2.msra.mxu0 0.0
  %492 = vmatprep.subr.mxu0 0.0
  %493 = vmatpush2.msra.mxu0 0.0
  %494 = vmatprep.subr.mxu0 0.0
  %495 = vmatpush2.msra.mxu0 0.0
  %496 = vmatprep.subr.mxu0 0.0
  %497 = vmatpush2.msra.mxu0 0.0
  %498 = vmatprep.subr.mxu0 0.0
  %499 = vmatpush2.msra.mxu0 0.0
  %500 = vmatprep.subr.mxu0 0.0
  %501 = vmatpush2.msra.mxu0 0.0
  %502 = vmatprep.mubr.f32.mxu0 0.0
  %503 = vmatmul.mubr.f32.gmra.mxu0 %v427
  %v504 = vpop.f32.mrf.mxu0
  %v505 = vadd.f32 %v423, %v504
  %v506 = vpop.f32.mrf.mxu0
  %507 = vmatprep.mubr.f32.mxu0 0.0
  %508 = vmatmul.mubr.f32.gmra.mxu0 %v430
  %v509 = vpop.f32.mrf.mxu0
  %v510 = vadd.f32 %v423, %v509
  %v511 = vpop.f32.mrf.mxu0
  %512 = vmatprep.mubr.f32.mxu0 0.0
  %513 = vmatmul.mubr.f32.gmra.mxu0 %v433
  %v514 = vpop.f32.mrf.mxu0
  %v515 = vadd.f32 %v423, %v514
  %v516 = vpop.f32.mrf.mxu0
  %517 = vmatprep.mubr.f32.mxu0 0.0
  %518 = vmatmul.mubr.f32.gmra.mxu0 %v436
  %v519 = vpop.f32.mrf.mxu0
  %v520 = vadd.f32 %v423, %v519
  %v521 = vpop.f32.mrf.mxu0
  %522 = vdwg.mxu0
  %v523 = vmul.f32 %v505, %v505
  %v524 = vmul.f32 %v510, %v510
  %v525 = vmul.f32 %v515, %v515
  %v526 = vmul.f32 %v520, %v520
  %v527 = vld [vmem:[%s6] sm:$0xff]
  %v528 = vld [vmem:[%s6 + $0x8] sm:$0xff]
  %v529 = vld [vmem:[%s6 + $0x10] sm:$0xff]
  %v530 = vld [vmem:[%s6 + $0x18] sm:$0xff]
  %v531 = vld [vmem:[%s6 + $0x20] sm:$0xff]
  %v532 = vld [vmem:[%s6 + $0x28] sm:$0xff]
  %v533 = vld [vmem:[%s6 + $0x30] sm:$0xff]
  %v534 = vld [vmem:[%s6 + $0x38] sm:$0xff]
  %v535 = vld [vmem:[%s6 + $0x40] sm:$0xff]
  %v536 = vld [vmem:[%s6 + $0x48] sm:$0xff]
  %v537 = vld [vmem:[%s6 + $0x50] sm:$0xff]
  %v538 = vld [vmem:[%s6 + $0x58] sm:$0xff]
  %v539 = vld [vmem:[%s6 + $0x60] sm:$0xff]
  %v540 = vld [vmem:[%s6 + $0x68] sm:$0xff]
  %v541 = vld [vmem:[%s6 + $0x70] sm:$0xff]
  %v542 = vld [vmem:[%s6 + $0x78] sm:$0xff]
  %543 = vmatprep.subr.mxu0 0.0
  %544 = vmatpush1.msra.mxu0 %v542
  %545 = vmatprep.subr.mxu0 0.0
  %546 = vmatpush1.msra.mxu0 %v541
  %547 = vmatprep.subr.mxu0 0.0
  %548 = vmatpush1.msra.mxu0 %v540
  %549 = vmatprep.subr.mxu0 0.0
  %550 = vmatpush1.msra.mxu0 %v539
  %551 = vmatprep.subr.mxu0 0.0
  %552 = vmatpush1.msra.mxu0 %v538
  %553 = vmatprep.subr.mxu0 0.0
  %554 = vmatpush1.msra.mxu0 %v537
  %555 = vmatprep.subr.mxu0 0.0
  %556 = vmatpush1.msra.mxu0 %v536
  %557 = vmatprep.subr.mxu0 0.0
  %558 = vmatpush1.msra.mxu0 %v535
  %559 = vmatprep.subr.mxu0 0.0
  %560 = vmatpush1.msra.mxu0 %v534
  %561 = vmatprep.subr.mxu0 0.0
  %562 = vmatpush1.msra.mxu0 %v533
  %563 = vmatprep.subr.mxu0 0.0
  %564 = vmatpush1.msra.mxu0 %v532
  %565 = vmatprep.subr.mxu0 0.0
  %566 = vmatpush1.msra.mxu0 %v531
  %567 = vmatprep.subr.mxu0 0.0
  %568 = vmatpush1.msra.mxu0 %v530
  %569 = vmatprep.subr.mxu0 0.0
  %570 = vmatpush1.msra.mxu0 %v529
  %571 = vmatprep.subr.mxu0 0.0
  %572 = vmatpush1.msra.mxu0 %v528
  %573 = vmatprep.subr.mxu0 0.0
  %574 = vmatpush1.msra.mxu0 %v527
  %575 = vmatprep.subr.mxu0 0.0
  %576 = vmatpush2.msra.mxu0 0.0
  %577 = vmatprep.subr.mxu0 0.0
  %578 = vmatpush2.msra.mxu0 0.0
  %579 = vmatprep.subr.mxu0 0.0
  %580 = vmatpush2.msra.mxu0 0.0
  %581 = vmatprep.subr.mxu0 0.0
  %582 = vmatpush2.msra.mxu0 0.0
  %583 = vmatprep.subr.mxu0 0.0
  %584 = vmatpush2.msra.mxu0 0.0
  %585 = vmatprep.subr.mxu0 0.0
  %586 = vmatpush2.msra.mxu0 0.0
  %587 = vmatprep.subr.mxu0 0.0
  %588 = vmatpush2.msra.mxu0 0.0
  %589 = vmatprep.subr.mxu0 0.0
  %590 = vmatpush2.msra.mxu0 0.0
  %591 = vmatprep.subr.mxu0 0.0
  %592 = vmatpush2.msra.mxu0 0.0
  %593 = vmatprep.subr.mxu0 0.0
  %594 = vmatpush2.msra.mxu0 0.0
  %595 = vmatprep.subr.mxu0 0.0
  %596 = vmatpush2.msra.mxu0 0.0
  %597 = vmatprep.subr.mxu0 0.0
  %598 = vmatpush2.msra.mxu0 0.0
  %599 = vmatprep.subr.mxu0 0.0
  %600 = vmatpush2.msra.mxu0 0.0
  %601 = vmatprep.subr.mxu0 0.0
  %602 = vmatpush2.msra.mxu0 0.0
  %603 = vmatprep.subr.mxu0 0.0
  %604 = vmatpush2.msra.mxu0 0.0
  %605 = vmatprep.subr.mxu0 0.0
  %606 = vmatpush2.msra.mxu0 0.0
  %607 = vmatprep.mubr.f32.mxu0 0.0
  %608 = vmatmul.mubr.f32.gmra.mxu0 %v505
  %v609 = vpop.f32.mrf.mxu0
  %v610 = vadd.f32 0.0, %v609
  %v611 = vpop.f32.mrf.mxu0
  %612 = vmatprep.mubr.f32.mxu0 0.0
  %613 = vmatmul.mubr.f32.gmra.mxu0 %v510
  %v614 = vpop.f32.mrf.mxu0
  %v615 = vadd.f32 0.0, %v614
  %v616 = vpop.f32.mrf.mxu0
  %617 = vmatprep.mubr.f32.mxu0 0.0
  %618 = vmatmul.mubr.f32.gmra.mxu0 %v515
  %v619 = vpop.f32.mrf.mxu0
  %v620 = vadd.f32 0.0, %v619
  %v621 = vpop.f32.mrf.mxu0
  %622 = vmatprep.mubr.f32.mxu0 0.0
  %623 = vmatmul.mubr.f32.gmra.mxu0 %v520
  %v624 = vpop.f32.mrf.mxu0
  %v625 = vadd.f32 0.0, %v624
  %v626 = vpop.f32.mrf.mxu0
  %627 = vmatprep.mubr.f32.mxu0 0.0
  %628 = vmatmul.mubr.f32.gmra.mxu0 %v523
  %v629 = vpop.f32.mrf.mxu0
  %v630 = vadd.f32 0.0, %v629
  %v631 = vpop.f32.mrf.mxu0
  %632 = vmatprep.mubr.f32.mxu0 0.0
  %633 = vmatmul.mubr.f32.gmra.mxu0 %v524
  %v634 = vpop.f32.mrf.mxu0
  %v635 = vadd.f32 0.0, %v634
  %v636 = vpop.f32.mrf.mxu0
  %637 = vmatprep.mubr.f32.mxu0 0.0
  %638 = vmatmul.mubr.f32.gmra.mxu0 %v525
  %v639 = vpop.f32.mrf.mxu0
  %v640 = vadd.f32 0.0, %v639
  %v641 = vpop.f32.mrf.mxu0
  %642 = vmatprep.mubr.f32.mxu0 0.0
  %643 = vmatmul.mubr.f32.gmra.mxu0 %v526
  %v644 = vpop.f32.mrf.mxu0
  %v645 = vadd.f32 0.0, %v644
  %v646 = vpop.f32.mrf.mxu0
  %647 = vdwg.mxu0
  %v648 = vmul.f32 %v610, %v610
  %v649 = vmul.f32 %v615, %v615
  %v650 = vmul.f32 %v620, %v620
  %v651 = vmul.f32 %v625, %v625
  %v652 = vsub.f32 %v630, %v648
  %v653 = vsub.f32 %v635, %v649
  %v654 = vsub.f32 %v640, %v650
  %v655 = vsub.f32 %v645, %v651
  %v656 = vadd.f32 %v652, 1e-05
  %v657 = vadd.f32 %v653, 1e-05
  %v658 = vadd.f32 %v654, 1e-05
  %v659 = vadd.f32 %v655, 1e-05
  %v660 = vrsqrt.pop %v656
  %v661 = vrsqrt.pop %v657
  %v662 = vrsqrt.pop %v658
  %v663 = vrsqrt.pop %v659
  %v664 = vmul.f32 %v505, %v660
  %v665 = vmul.f32 %v510, %v661
  %v666 = vmul.f32 %v515, %v662
  %v667 = vmul.f32 %v520, %v663
  %v668 = vld [vmem:[%s7] sm:$0x1]
  %v670 = vlaneseq
  %v671 = vshrl.u32 %v670, 7
  %v672 = vsub.s32 0, %v671
  %v673 = vrot.slane %v668, %v672
  %v675 = vmul.f32 %v664, %v673
  %v676 = vmul.f32 %v665, %v673
  %v677 = vmul.f32 %v666, %v673
  %v678 = vmul.f32 %v667, %v673
  %v679 = vld [vmem:[%s8] sm:$0xff]
  %v680 = vld [vmem:[%s8 + $0x8] sm:$0xff]
  %v681 = vld [vmem:[%s8 + $0x10] sm:$0xff]
  %v682 = vld [vmem:[%s8 + $0x18] sm:$0xff]
  %v683 = vld [vmem:[%s8 + $0x20] sm:$0xff]
  %v684 = vld [vmem:[%s8 + $0x28] sm:$0xff]
  %v685 = vld [vmem:[%s8 + $0x30] sm:$0xff]
  %v686 = vld [vmem:[%s8 + $0x38] sm:$0xff]
  %v687 = vld [vmem:[%s8 + $0x40] sm:$0xff]
  %v688 = vld [vmem:[%s8 + $0x48] sm:$0xff]
  %v689 = vld [vmem:[%s8 + $0x50] sm:$0xff]
  %v690 = vld [vmem:[%s8 + $0x58] sm:$0xff]
  %v691 = vld [vmem:[%s8 + $0x60] sm:$0xff]
  %v692 = vld [vmem:[%s8 + $0x68] sm:$0xff]
  %v693 = vld [vmem:[%s8 + $0x70] sm:$0xff]
  %v694 = vld [vmem:[%s8 + $0x78] sm:$0xff]
  %v695 = vld [vmem:[%s8 + $0x80] sm:$0xff]
  %v696 = vld [vmem:[%s8 + $0x88] sm:$0xff]
  %v697 = vld [vmem:[%s8 + $0x90] sm:$0xff]
  %v698 = vld [vmem:[%s8 + $0x98] sm:$0xff]
  %v699 = vld [vmem:[%s8 + $0xa0] sm:$0xff]
  %v700 = vld [vmem:[%s8 + $0xa8] sm:$0xff]
  %v701 = vld [vmem:[%s8 + $0xb0] sm:$0xff]
  %v702 = vld [vmem:[%s8 + $0xb8] sm:$0xff]
  %v703 = vld [vmem:[%s8 + $0xc0] sm:$0xff]
  %v704 = vld [vmem:[%s8 + $0xc8] sm:$0xff]
  %v705 = vld [vmem:[%s8 + $0xd0] sm:$0xff]
  %v706 = vld [vmem:[%s8 + $0xd8] sm:$0xff]
  %v707 = vld [vmem:[%s8 + $0xe0] sm:$0xff]
  %v708 = vld [vmem:[%s8 + $0xe8] sm:$0xff]
  %v709 = vld [vmem:[%s8 + $0xf0] sm:$0xff]
  %v710 = vld [vmem:[%s8 + $0xf8] sm:$0xff]
  %v711 = vld [vmem:[%s8 + $0x100] sm:$0xff]
  %v712 = vld [vmem:[%s8 + $0x108] sm:$0xff]
  %v713 = vld [vmem:[%s8 + $0x110] sm:$0xff]
  %v714 = vld [vmem:[%s8 + $0x118] sm:$0xff]
  %v715 = vld [vmem:[%s8 + $0x120] sm:$0xff]
  %v716 = vld [vmem:[%s8 + $0x128] sm:$0xff]
  %v717 = vld [vmem:[%s8 + $0x130] sm:$0xff]
  %v718 = vld [vmem:[%s8 + $0x138] sm:$0xff]
  %v719 = vld [vmem:[%s8 + $0x140] sm:$0xff]
  %v720 = vld [vmem:[%s8 + $0x148] sm:$0xff]
  %v721 = vld [vmem:[%s8 + $0x150] sm:$0xff]
  %v722 = vld [vmem:[%s8 + $0x158] sm:$0xff]
  %v723 = vld [vmem:[%s8 + $0x160] sm:$0xff]
  %v724 = vld [vmem:[%s8 + $0x168] sm:$0xff]
  %v725 = vld [vmem:[%s8 + $0x170] sm:$0xff]
  %v726 = vld [vmem:[%s8 + $0x178] sm:$0xff]
  %v727 = vld [vmem:[%s8 + $0x180] sm:$0xff]
  %v728 = vld [vmem:[%s8 + $0x188] sm:$0xff]
  %v729 = vld [vmem:[%s8 + $0x190] sm:$0xff]
  %v730 = vld [vmem:[%s8 + $0x198] sm:$0xff]
  %v731 = vld [vmem:[%s8 + $0x1a0] sm:$0xff]
  %v732 = vld [vmem:[%s8 + $0x1a8] sm:$0xff]
  %v733 = vld [vmem:[%s8 + $0x1b0] sm:$0xff]
  %v734 = vld [vmem:[%s8 + $0x1b8] sm:$0xff]
  %v735 = vld [vmem:[%s8 + $0x1c0] sm:$0xff]
  %v736 = vld [vmem:[%s8 + $0x1c8] sm:$0xff]
  %v737 = vld [vmem:[%s8 + $0x1d0] sm:$0xff]
  %v738 = vld [vmem:[%s8 + $0x1d8] sm:$0xff]
  %v739 = vld [vmem:[%s8 + $0x1e0] sm:$0xff]
  %v740 = vld [vmem:[%s8 + $0x1e8] sm:$0xff]
  %v741 = vld [vmem:[%s8 + $0x1f0] sm:$0xff]
  %v742 = vld [vmem:[%s8 + $0x1f8] sm:$0xff]
  %743 = vmatprep.subr.mxu0 %v740
  %744 = vmatpush1.msra.mxu0 %v739
  %745 = vmatprep.subr.mxu0 %v736
  %746 = vmatpush1.msra.mxu0 %v735
  %747 = vmatprep.subr.mxu0 %v732
  %748 = vmatpush1.msra.mxu0 %v731
  %749 = vmatprep.subr.mxu0 %v728
  %750 = vmatpush1.msra.mxu0 %v727
  %751 = vmatprep.subr.mxu0 %v724
  %752 = vmatpush1.msra.mxu0 %v723
  %753 = vmatprep.subr.mxu0 %v720
  %754 = vmatpush1.msra.mxu0 %v719
  %755 = vmatprep.subr.mxu0 %v716
  %756 = vmatpush1.msra.mxu0 %v715
  %757 = vmatprep.subr.mxu0 %v712
  %758 = vmatpush1.msra.mxu0 %v711
  %759 = vmatprep.subr.mxu0 %v708
  %760 = vmatpush1.msra.mxu0 %v707
  %761 = vmatprep.subr.mxu0 %v704
  %762 = vmatpush1.msra.mxu0 %v703
  %763 = vmatprep.subr.mxu0 %v700
  %764 = vmatpush1.msra.mxu0 %v699
  %765 = vmatprep.subr.mxu0 %v696
  %766 = vmatpush1.msra.mxu0 %v695
  %767 = vmatprep.subr.mxu0 %v692
  %768 = vmatpush1.msra.mxu0 %v691
  %769 = vmatprep.subr.mxu0 %v688
  %770 = vmatpush1.msra.mxu0 %v687
  %771 = vmatprep.subr.mxu0 %v684
  %772 = vmatpush1.msra.mxu0 %v683
  %773 = vmatprep.subr.mxu0 %v680
  %774 = vmatpush1.msra.mxu0 %v679
  %775 = vmatprep.subr.mxu0 0.0
  %776 = vmatpush2.msra.mxu0 0.0
  %777 = vmatprep.subr.mxu0 0.0
  %778 = vmatpush2.msra.mxu0 0.0
  %779 = vmatprep.subr.mxu0 0.0
  %780 = vmatpush2.msra.mxu0 0.0
  %781 = vmatprep.subr.mxu0 0.0
  %782 = vmatpush2.msra.mxu0 0.0
  %783 = vmatprep.subr.mxu0 0.0
  %784 = vmatpush2.msra.mxu0 0.0
  %785 = vmatprep.subr.mxu0 0.0
  %786 = vmatpush2.msra.mxu0 0.0
  %787 = vmatprep.subr.mxu0 0.0
  %788 = vmatpush2.msra.mxu0 0.0
  %789 = vmatprep.subr.mxu0 0.0
  %790 = vmatpush2.msra.mxu0 0.0
  %791 = vmatprep.subr.mxu0 0.0
  %792 = vmatpush2.msra.mxu0 0.0
  %793 = vmatprep.subr.mxu0 0.0
  %794 = vmatpush2.msra.mxu0 0.0
  %795 = vmatprep.subr.mxu0 0.0
  %796 = vmatpush2.msra.mxu0 0.0
  %797 = vmatprep.subr.mxu0 0.0
  %798 = vmatpush2.msra.mxu0 0.0
  %799 = vmatprep.subr.mxu0 0.0
  %800 = vmatpush2.msra.mxu0 0.0
  %801 = vmatprep.subr.mxu0 0.0
  %802 = vmatpush2.msra.mxu0 0.0
  %803 = vmatprep.subr.mxu0 0.0
  %804 = vmatpush2.msra.mxu0 0.0
  %805 = vmatprep.subr.mxu0 0.0
  %806 = vmatpush2.msra.mxu0 0.0
  %807 = vmatprep.mubr.f32.mxu0 0.0
  %808 = vmatmul.mubr.f32.gmra.mxu0 %v675
  %v809 = vpop.f32.mrf.mxu0
  %v810 = vadd.f32 0.0, %v809
  %v811 = vpop.f32.mrf.mxu0
  %v812 = vadd.f32 0.0, %v811
  %813 = vmatprep.mubr.f32.mxu0 0.0
  %814 = vmatmul.mubr.f32.gmra.mxu0 %v676
  %v815 = vpop.f32.mrf.mxu0
  %v816 = vadd.f32 0.0, %v815
  %v817 = vpop.f32.mrf.mxu0
  %v818 = vadd.f32 0.0, %v817
  %819 = vmatprep.mubr.f32.mxu0 0.0
  %820 = vmatmul.mubr.f32.gmra.mxu0 %v677
  %v821 = vpop.f32.mrf.mxu0
  %v822 = vadd.f32 0.0, %v821
  %v823 = vpop.f32.mrf.mxu0
  %v824 = vadd.f32 0.0, %v823
  %825 = vmatprep.mubr.f32.mxu0 0.0
  %826 = vmatmul.mubr.f32.gmra.mxu0 %v678
  %v827 = vpop.f32.mrf.mxu0
  %v828 = vadd.f32 0.0, %v827
  %v829 = vpop.f32.mrf.mxu0
  %v830 = vadd.f32 0.0, %v829
  %831 = vdwg.mxu0
  %832 = vmatprep.subr.mxu0 %v742
  %833 = vmatpush1.msra.mxu0 %v741
  %834 = vmatprep.subr.mxu0 %v738
  %835 = vmatpush1.msra.mxu0 %v737
  %836 = vmatprep.subr.mxu0 %v734
  %837 = vmatpush1.msra.mxu0 %v733
  %838 = vmatprep.subr.mxu0 %v730
  %839 = vmatpush1.msra.mxu0 %v729
  %840 = vmatprep.subr.mxu0 %v726
  %841 = vmatpush1.msra.mxu0 %v725
  %842 = vmatprep.subr.mxu0 %v722
  %843 = vmatpush1.msra.mxu0 %v721
  %844 = vmatprep.subr.mxu0 %v718
  %845 = vmatpush1.msra.mxu0 %v717
  %846 = vmatprep.subr.mxu0 %v714
  %847 = vmatpush1.msra.mxu0 %v713
  %848 = vmatprep.subr.mxu0 %v710
  %849 = vmatpush1.msra.mxu0 %v709
  %850 = vmatprep.subr.mxu0 %v706
  %851 = vmatpush1.msra.mxu0 %v705
  %852 = vmatprep.subr.mxu0 %v702
  %853 = vmatpush1.msra.mxu0 %v701
  %854 = vmatprep.subr.mxu0 %v698
  %855 = vmatpush1.msra.mxu0 %v697
  %856 = vmatprep.subr.mxu0 %v694
  %857 = vmatpush1.msra.mxu0 %v693
  %858 = vmatprep.subr.mxu0 %v690
  %859 = vmatpush1.msra.mxu0 %v689
  %860 = vmatprep.subr.mxu0 %v686
  %861 = vmatpush1.msra.mxu0 %v685
  %862 = vmatprep.subr.mxu0 %v682
  %863 = vmatpush1.msra.mxu0 %v681
  %864 = vmatprep.subr.mxu0 0.0
  %865 = vmatpush2.msra.mxu0 0.0
  %866 = vmatprep.subr.mxu0 0.0
  %867 = vmatpush2.msra.mxu0 0.0
  %868 = vmatprep.subr.mxu0 0.0
  %869 = vmatpush2.msra.mxu0 0.0
  %870 = vmatprep.subr.mxu0 0.0
  %871 = vmatpush2.msra.mxu0 0.0
  %872 = vmatprep.subr.mxu0 0.0
  %873 = vmatpush2.msra.mxu0 0.0
  %874 = vmatprep.subr.mxu0 0.0
  %875 = vmatpush2.msra.mxu0 0.0
  %876 = vmatprep.subr.mxu0 0.0
  %877 = vmatpush2.msra.mxu0 0.0
  %878 = vmatprep.subr.mxu0 0.0
  %879 = vmatpush2.msra.mxu0 0.0
  %880 = vmatprep.subr.mxu0 0.0
  %881 = vmatpush2.msra.mxu0 0.0
  %882 = vmatprep.subr.mxu0 0.0
  %883 = vmatpush2.msra.mxu0 0.0
  %884 = vmatprep.subr.mxu0 0.0
  %885 = vmatpush2.msra.mxu0 0.0
  %886 = vmatprep.subr.mxu0 0.0
  %887 = vmatpush2.msra.mxu0 0.0
  %888 = vmatprep.subr.mxu0 0.0
  %889 = vmatpush2.msra.mxu0 0.0
  %890 = vmatprep.subr.mxu0 0.0
  %891 = vmatpush2.msra.mxu0 0.0
  %892 = vmatprep.subr.mxu0 0.0
  %893 = vmatpush2.msra.mxu0 0.0
  %894 = vmatprep.subr.mxu0 0.0
  %895 = vmatpush2.msra.mxu0 0.0
  %896 = vmatprep.mubr.f32.mxu0 0.0
  %897 = vmatmul.mubr.f32.gmra.mxu0 %v675
  %v898 = vpop.f32.mrf.mxu0
  %v899 = vadd.f32 0.0, %v898
  %v900 = vpop.f32.mrf.mxu0
  %v901 = vadd.f32 0.0, %v900
  %902 = vmatprep.mubr.f32.mxu0 0.0
  %903 = vmatmul.mubr.f32.gmra.mxu0 %v676
  %v904 = vpop.f32.mrf.mxu0
  %v905 = vadd.f32 0.0, %v904
  %v906 = vpop.f32.mrf.mxu0
  %v907 = vadd.f32 0.0, %v906
  %908 = vmatprep.mubr.f32.mxu0 0.0
  %909 = vmatmul.mubr.f32.gmra.mxu0 %v677
  %v910 = vpop.f32.mrf.mxu0
  %v911 = vadd.f32 0.0, %v910
  %v912 = vpop.f32.mrf.mxu0
  %v913 = vadd.f32 0.0, %v912
  %914 = vmatprep.mubr.f32.mxu0 0.0
  %915 = vmatmul.mubr.f32.gmra.mxu0 %v678
  %v916 = vpop.f32.mrf.mxu0
  %v917 = vadd.f32 0.0, %v916
  %v918 = vpop.f32.mrf.mxu0
  %v919 = vadd.f32 0.0, %v918
  %920 = vdwg.mxu0
  %v921 = vld [vmem:[%s10] sm:$0xf]
  %v922 = vld [vmem:[%s11] sm:$0xf]
  %939 = vrot.lane.b32.xlu0 %v810, 16
  %v940 = vpop.permute.xlu0 %939
  %941 = vrot.lane.b32.xlu0 %v812, 16
  %v942 = vpop.permute.xlu0 %941
  %943 = vrot.lane.b32.xlu0 %v899, 16
  %v944 = vpop.permute.xlu0 %943
  %945 = vrot.lane.b32.xlu0 %v901, 16
  %v946 = vpop.permute.xlu0 %945
  %947 = vrot.lane.b32.xlu0 %v816, 16
  %v948 = vpop.permute.xlu0 %947
  %949 = vrot.lane.b32.xlu0 %v818, 16
  %v950 = vpop.permute.xlu0 %949
  %951 = vrot.lane.b32.xlu0 %v905, 16
  %v952 = vpop.permute.xlu0 %951
  %953 = vrot.lane.b32.xlu0 %v907, 16
  %v954 = vpop.permute.xlu0 %953
  %955 = vrot.lane.b32.xlu0 %v822, 16
  %v956 = vpop.permute.xlu0 %955
  %957 = vrot.lane.b32.xlu0 %v824, 16
  %v958 = vpop.permute.xlu0 %957
  %959 = vrot.lane.b32.xlu0 %v911, 16
  %v960 = vpop.permute.xlu0 %959
  %961 = vrot.lane.b32.xlu0 %v913, 16
  %v962 = vpop.permute.xlu0 %961
  %963 = vrot.lane.b32.xlu0 %v828, 16
  %v964 = vpop.permute.xlu0 %963
  %965 = vrot.lane.b32.xlu0 %v830, 16
  %v966 = vpop.permute.xlu0 %965
  %967 = vrot.lane.b32.xlu0 %v917, 16
  %v968 = vpop.permute.xlu0 %967
  %969 = vrot.lane.b32.xlu0 %v919, 16
  %v970 = vpop.permute.xlu0 %969
  %vm971 = vcmask 130048
  %v972 = vsel %vm971, %v940, %v942
  %v973 = vsel %vm971, %v942, %v944
  %v974 = vsel %vm971, %v944, %v946
  %v975 = vsel %vm971, %v948, %v950
  %v976 = vsel %vm971, %v950, %v952
  %v977 = vsel %vm971, %v952, %v954
  %v978 = vsel %vm971, %v956, %v958
  %v979 = vsel %vm971, %v958, %v960
  %v980 = vsel %vm971, %v960, %v962
  %v981 = vsel %vm971, %v964, %v966
  %v982 = vsel %vm971, %v966, %v968
  %v983 = vsel %vm971, %v968, %v970
  %v1000 = vsel %vm971, 0.0, %v940
  %v1001 = vsel %vm971, 0.0, %v948
  %v1002 = vsel %vm971, 0.0, %v956
  %v1003 = vsel %vm971, 0.0, %v964
  %1004 = vrot.lane.b32.xlu0 %v810, 112
  %v1005 = vpop.permute.xlu0 %1004
  %1006 = vrot.lane.b32.xlu0 %v812, 112
  %v1007 = vpop.permute.xlu0 %1006
  %1008 = vrot.lane.b32.xlu0 %v899, 112
  %v1009 = vpop.permute.xlu0 %1008
  %1010 = vrot.lane.b32.xlu0 %v901, 112
  %v1011 = vpop.permute.xlu0 %1010
  %1012 = vrot.lane.b32.xlu0 %v816, 112
  %v1013 = vpop.permute.xlu0 %1012
  %1014 = vrot.lane.b32.xlu0 %v818, 112
  %v1015 = vpop.permute.xlu0 %1014
  %1016 = vrot.lane.b32.xlu0 %v905, 112
  %v1017 = vpop.permute.xlu0 %1016
  %1018 = vrot.lane.b32.xlu0 %v907, 112
  %v1019 = vpop.permute.xlu0 %1018
  %1020 = vrot.lane.b32.xlu0 %v822, 112
  %v1021 = vpop.permute.xlu0 %1020
  %1022 = vrot.lane.b32.xlu0 %v824, 112
  %v1023 = vpop.permute.xlu0 %1022
  %1024 = vrot.lane.b32.xlu0 %v911, 112
  %v1025 = vpop.permute.xlu0 %1024
  %1026 = vrot.lane.b32.xlu0 %v913, 112
  %v1027 = vpop.permute.xlu0 %1026
  %1028 = vrot.lane.b32.xlu0 %v828, 112
  %v1029 = vpop.permute.xlu0 %1028
  %1030 = vrot.lane.b32.xlu0 %v830, 112
  %v1031 = vpop.permute.xlu0 %1030
  %1032 = vrot.lane.b32.xlu0 %v917, 112
  %v1033 = vpop.permute.xlu0 %1032
  %1034 = vrot.lane.b32.xlu0 %v919, 112
  %v1035 = vpop.permute.xlu0 %1034
  %vm1036 = vcmask 916480
  %v1037 = vsel %vm1036, %v1005, %v1007
  %v1038 = vsel %vm1036, %v1007, %v1009
  %v1039 = vsel %vm1036, %v1009, %v1011
  %v1040 = vsel %vm1036, %v1013, %v1015
  %v1041 = vsel %vm1036, %v1015, %v1017
  %v1042 = vsel %vm1036, %v1017, %v1019
  %v1043 = vsel %vm1036, %v1021, %v1023
  %v1044 = vsel %vm1036, %v1023, %v1025
  %v1045 = vsel %vm1036, %v1025, %v1027
  %v1046 = vsel %vm1036, %v1029, %v1031
  %v1047 = vsel %vm1036, %v1031, %v1033
  %v1048 = vsel %vm1036, %v1033, %v1035
  %v1065 = vsel %vm1036, %v1011, 0.0
  %v1066 = vsel %vm1036, %v1019, 0.0
  %v1067 = vsel %vm1036, %v1027, 0.0
  %v1068 = vsel %vm1036, %v1035, 0.0
  %v1070 = vlaneseq
  %v1071 = vshrl.u32 %v1070, 7
  %v1072 = vsub.s32 0, %v1071
  %v1073 = vrot.slane %v921, %v1072
  %v1074 = vlaneseq
  %v1075 = vshrl.u32 %v1074, 7
  %v1076 = vsub.s32 1, %v1075
  %v1077 = vrot.slane %v921, %v1076
  %v1078 = vlaneseq
  %v1079 = vshrl.u32 %v1078, 7
  %v1080 = vsub.s32 2, %v1079
  %v1081 = vrot.slane %v921, %v1080
  %v1082 = vlaneseq
  %v1083 = vshrl.u32 %v1082, 7
  %v1084 = vsub.s32 3, %v1083
  %v1085 = vrot.slane %v921, %v1084
  %v1090 = vmul.f32 %v1000, %v1073
  %v1091 = vmul.f32 %v972, %v1077
  %v1092 = vmul.f32 %v973, %v1081
  %v1093 = vmul.f32 %v974, %v1085
  %v1094 = vmul.f32 %v1001, %v1073
  %v1095 = vmul.f32 %v975, %v1077
  %v1096 = vmul.f32 %v976, %v1081
  %v1097 = vmul.f32 %v977, %v1085
  %v1098 = vmul.f32 %v1002, %v1073
  %v1099 = vmul.f32 %v978, %v1077
  %v1100 = vmul.f32 %v979, %v1081
  %v1101 = vmul.f32 %v980, %v1085
  %v1102 = vmul.f32 %v1003, %v1073
  %v1103 = vmul.f32 %v981, %v1077
  %v1104 = vmul.f32 %v982, %v1081
  %v1105 = vmul.f32 %v983, %v1085
  %v1107 = vlaneseq
  %v1108 = vshrl.u32 %v1107, 7
  %v1109 = vsub.s32 0, %v1108
  %v1110 = vrot.slane %v922, %v1109
  %v1111 = vlaneseq
  %v1112 = vshrl.u32 %v1111, 7
  %v1113 = vsub.s32 1, %v1112
  %v1114 = vrot.slane %v922, %v1113
  %v1115 = vlaneseq
  %v1116 = vshrl.u32 %v1115, 7
  %v1117 = vsub.s32 2, %v1116
  %v1118 = vrot.slane %v922, %v1117
  %v1119 = vlaneseq
  %v1120 = vshrl.u32 %v1119, 7
  %v1121 = vsub.s32 3, %v1120
  %v1122 = vrot.slane %v922, %v1121
  %v1127 = vmul.f32 %v1037, %v1110
  %v1128 = vmul.f32 %v1038, %v1114
  %v1129 = vmul.f32 %v1039, %v1118
  %v1130 = vmul.f32 %v1065, %v1122
  %v1131 = vmul.f32 %v1040, %v1110
  %v1132 = vmul.f32 %v1041, %v1114
  %v1133 = vmul.f32 %v1042, %v1118
  %v1134 = vmul.f32 %v1066, %v1122
  %v1135 = vmul.f32 %v1043, %v1110
  %v1136 = vmul.f32 %v1044, %v1114
  %v1137 = vmul.f32 %v1045, %v1118
  %v1138 = vmul.f32 %v1067, %v1122
  %v1139 = vmul.f32 %v1046, %v1110
  %v1140 = vmul.f32 %v1047, %v1114
  %v1141 = vmul.f32 %v1048, %v1118
  %v1142 = vmul.f32 %v1068, %v1122
  %s1143 = scalar_lea.vmem %s9, 1
  %v1144 = vld [vmem:[%s1143] ss:$8 sm:$0xf]
  %v1146 = vlaneseq
  %v1147 = vshrl.u32 %v1146, 7
  %v1148 = vsub.s32 0, %v1147
  %v1149 = vrot.slane %v1144, %v1148
  %v1150 = vlaneseq
  %v1151 = vshrl.u32 %v1150, 7
  %v1152 = vsub.s32 1, %v1151
  %v1153 = vrot.slane %v1144, %v1152
  %v1154 = vlaneseq
  %v1155 = vshrl.u32 %v1154, 7
  %v1156 = vsub.s32 2, %v1155
  %v1157 = vrot.slane %v1144, %v1156
  %v1158 = vlaneseq
  %v1159 = vshrl.u32 %v1158, 7
  %v1160 = vsub.s32 3, %v1159
  %v1161 = vrot.slane %v1144, %v1160
  %v1166 = vmul.f32 %v810, %v1149
  %v1167 = vmul.f32 %v812, %v1153
  %v1168 = vmul.f32 %v899, %v1157
  %v1169 = vmul.f32 %v901, %v1161
  %v1170 = vmul.f32 %v816, %v1149
  %v1171 = vmul.f32 %v818, %v1153
  %v1172 = vmul.f32 %v905, %v1157
  %v1173 = vmul.f32 %v907, %v1161
  %v1174 = vmul.f32 %v822, %v1149
  %v1175 = vmul.f32 %v824, %v1153
  %v1176 = vmul.f32 %v911, %v1157
  %v1177 = vmul.f32 %v913, %v1161
  %v1178 = vmul.f32 %v828, %v1149
  %v1179 = vmul.f32 %v830, %v1153
  %v1180 = vmul.f32 %v917, %v1157
  %v1181 = vmul.f32 %v919, %v1161
  %v1182 = vld [vmem:[%s9] ss:$8 sm:$0xf]
  %v1184 = vlaneseq
  %v1185 = vshrl.u32 %v1184, 7
  %v1186 = vsub.s32 0, %v1185
  %v1187 = vrot.slane %v1182, %v1186
  %v1188 = vlaneseq
  %v1189 = vshrl.u32 %v1188, 7
  %v1190 = vsub.s32 1, %v1189
  %v1191 = vrot.slane %v1182, %v1190
  %v1192 = vlaneseq
  %v1193 = vshrl.u32 %v1192, 7
  %v1194 = vsub.s32 2, %v1193
  %v1195 = vrot.slane %v1182, %v1194
  %v1196 = vlaneseq
  %v1197 = vshrl.u32 %v1196, 7
  %v1198 = vsub.s32 3, %v1197
  %v1199 = vrot.slane %v1182, %v1198
  %v1204 = vmul.f32 %v1090, %v1187
  %v1205 = vmul.f32 %v1091, %v1191
  %v1206 = vmul.f32 %v1092, %v1195
  %v1207 = vmul.f32 %v1093, %v1199
  %v1208 = vmul.f32 %v1094, %v1187
  %v1209 = vmul.f32 %v1095, %v1191
  %v1210 = vmul.f32 %v1096, %v1195
  %v1211 = vmul.f32 %v1097, %v1199
  %v1212 = vmul.f32 %v1098, %v1187
  %v1213 = vmul.f32 %v1099, %v1191
  %v1214 = vmul.f32 %v1100, %v1195
  %v1215 = vmul.f32 %v1101, %v1199
  %v1216 = vmul.f32 %v1102, %v1187
  %v1217 = vmul.f32 %v1103, %v1191
  %v1218 = vmul.f32 %v1104, %v1195
  %v1219 = vmul.f32 %v1105, %v1199
  %v1220 = vadd.f32 %v1166, %v1204
  %v1221 = vadd.f32 %v1167, %v1205
  %v1222 = vadd.f32 %v1168, %v1206
  %v1223 = vadd.f32 %v1169, %v1207
  %v1224 = vadd.f32 %v1170, %v1208
  %v1225 = vadd.f32 %v1171, %v1209
  %v1226 = vadd.f32 %v1172, %v1210
  %v1227 = vadd.f32 %v1173, %v1211
  %v1228 = vadd.f32 %v1174, %v1212
  %v1229 = vadd.f32 %v1175, %v1213
  %v1230 = vadd.f32 %v1176, %v1214
  %v1231 = vadd.f32 %v1177, %v1215
  %v1232 = vadd.f32 %v1178, %v1216
  %v1233 = vadd.f32 %v1179, %v1217
  %v1234 = vadd.f32 %v1180, %v1218
  %v1235 = vadd.f32 %v1181, %v1219
  %s1236 = scalar_lea.vmem %s9, 2
  %v1237 = vld [vmem:[%s1236] ss:$8 sm:$0xf]
  %v1239 = vlaneseq
  %v1240 = vshrl.u32 %v1239, 7
  %v1241 = vsub.s32 0, %v1240
  %v1242 = vrot.slane %v1237, %v1241
  %v1243 = vlaneseq
  %v1244 = vshrl.u32 %v1243, 7
  %v1245 = vsub.s32 1, %v1244
  %v1246 = vrot.slane %v1237, %v1245
  %v1247 = vlaneseq
  %v1248 = vshrl.u32 %v1247, 7
  %v1249 = vsub.s32 2, %v1248
  %v1250 = vrot.slane %v1237, %v1249
  %v1251 = vlaneseq
  %v1252 = vshrl.u32 %v1251, 7
  %v1253 = vsub.s32 3, %v1252
  %v1254 = vrot.slane %v1237, %v1253
  %v1259 = vmul.f32 %v1127, %v1242
  %v1260 = vmul.f32 %v1128, %v1246
  %v1261 = vmul.f32 %v1129, %v1250
  %v1262 = vmul.f32 %v1130, %v1254
  %v1263 = vmul.f32 %v1131, %v1242
  %v1264 = vmul.f32 %v1132, %v1246
  %v1265 = vmul.f32 %v1133, %v1250
  %v1266 = vmul.f32 %v1134, %v1254
  %v1267 = vmul.f32 %v1135, %v1242
  %v1268 = vmul.f32 %v1136, %v1246
  %v1269 = vmul.f32 %v1137, %v1250
  %v1270 = vmul.f32 %v1138, %v1254
  %v1271 = vmul.f32 %v1139, %v1242
  %v1272 = vmul.f32 %v1140, %v1246
  %v1273 = vmul.f32 %v1141, %v1250
  %v1274 = vmul.f32 %v1142, %v1254
  %v1275 = vadd.f32 %v1220, %v1259
  %v1276 = vadd.f32 %v1221, %v1260
  %v1277 = vadd.f32 %v1222, %v1261
  %v1278 = vadd.f32 %v1223, %v1262
  %v1279 = vadd.f32 %v1224, %v1263
  %v1280 = vadd.f32 %v1225, %v1264
  %v1281 = vadd.f32 %v1226, %v1265
  %v1282 = vadd.f32 %v1227, %v1266
  %v1283 = vadd.f32 %v1228, %v1267
  %v1284 = vadd.f32 %v1229, %v1268
  %v1285 = vadd.f32 %v1230, %v1269
  %v1286 = vadd.f32 %v1231, %v1270
  %v1287 = vadd.f32 %v1232, %v1271
  %v1288 = vadd.f32 %v1233, %v1272
  %v1289 = vadd.f32 %v1234, %v1273
  %v1290 = vadd.f32 %v1235, %v1274
  %s1291 = scalar_lea.vmem %s9, 4
  %v1292 = vld [vmem:[%s1291] ss:$8 sm:$0xf]
  %v1294 = vlaneseq
  %v1295 = vshrl.u32 %v1294, 7
  %v1296 = vsub.s32 0, %v1295
  %v1297 = vrot.slane %v1292, %v1296
  %v1298 = vlaneseq
  %v1299 = vshrl.u32 %v1298, 7
  %v1300 = vsub.s32 1, %v1299
  %v1301 = vrot.slane %v1292, %v1300
  %v1302 = vlaneseq
  %v1303 = vshrl.u32 %v1302, 7
  %v1304 = vsub.s32 2, %v1303
  %v1305 = vrot.slane %v1292, %v1304
  %v1306 = vlaneseq
  %v1307 = vshrl.u32 %v1306, 7
  %v1308 = vsub.s32 3, %v1307
  %v1309 = vrot.slane %v1292, %v1308
  %v1314 = vmul.f32 %v810, %v1297
  %v1315 = vmul.f32 %v812, %v1301
  %v1316 = vmul.f32 %v899, %v1305
  %v1317 = vmul.f32 %v901, %v1309
  %v1318 = vmul.f32 %v816, %v1297
  %v1319 = vmul.f32 %v818, %v1301
  %v1320 = vmul.f32 %v905, %v1305
  %v1321 = vmul.f32 %v907, %v1309
  %v1322 = vmul.f32 %v822, %v1297
  %v1323 = vmul.f32 %v824, %v1301
  %v1324 = vmul.f32 %v911, %v1305
  %v1325 = vmul.f32 %v913, %v1309
  %v1326 = vmul.f32 %v828, %v1297
  %v1327 = vmul.f32 %v830, %v1301
  %v1328 = vmul.f32 %v917, %v1305
  %v1329 = vmul.f32 %v919, %v1309
  %s1330 = scalar_lea.vmem %s9, 3
  %v1331 = vld [vmem:[%s1330] ss:$8 sm:$0xf]
  %v1333 = vlaneseq
  %v1334 = vshrl.u32 %v1333, 7
  %v1335 = vsub.s32 0, %v1334
  %v1336 = vrot.slane %v1331, %v1335
  %v1337 = vlaneseq
  %v1338 = vshrl.u32 %v1337, 7
  %v1339 = vsub.s32 1, %v1338
  %v1340 = vrot.slane %v1331, %v1339
  %v1341 = vlaneseq
  %v1342 = vshrl.u32 %v1341, 7
  %v1343 = vsub.s32 2, %v1342
  %v1344 = vrot.slane %v1331, %v1343
  %v1345 = vlaneseq
  %v1346 = vshrl.u32 %v1345, 7
  %v1347 = vsub.s32 3, %v1346
  %v1348 = vrot.slane %v1331, %v1347
  %v1353 = vmul.f32 %v1090, %v1336
  %v1354 = vmul.f32 %v1091, %v1340
  %v1355 = vmul.f32 %v1092, %v1344
  %v1356 = vmul.f32 %v1093, %v1348
  %v1357 = vmul.f32 %v1094, %v1336
  %v1358 = vmul.f32 %v1095, %v1340
  %v1359 = vmul.f32 %v1096, %v1344
  %v1360 = vmul.f32 %v1097, %v1348
  %v1361 = vmul.f32 %v1098, %v1336
  %v1362 = vmul.f32 %v1099, %v1340
  %v1363 = vmul.f32 %v1100, %v1344
  %v1364 = vmul.f32 %v1101, %v1348
  %v1365 = vmul.f32 %v1102, %v1336
  %v1366 = vmul.f32 %v1103, %v1340
  %v1367 = vmul.f32 %v1104, %v1344
  %v1368 = vmul.f32 %v1105, %v1348
  %v1369 = vadd.f32 %v1314, %v1353
  %v1370 = vadd.f32 %v1315, %v1354
  %v1371 = vadd.f32 %v1316, %v1355
  %v1372 = vadd.f32 %v1317, %v1356
  %v1373 = vadd.f32 %v1318, %v1357
  %v1374 = vadd.f32 %v1319, %v1358
  %v1375 = vadd.f32 %v1320, %v1359
  %v1376 = vadd.f32 %v1321, %v1360
  %v1377 = vadd.f32 %v1322, %v1361
  %v1378 = vadd.f32 %v1323, %v1362
  %v1379 = vadd.f32 %v1324, %v1363
  %v1380 = vadd.f32 %v1325, %v1364
  %v1381 = vadd.f32 %v1326, %v1365
  %v1382 = vadd.f32 %v1327, %v1366
  %v1383 = vadd.f32 %v1328, %v1367
  %v1384 = vadd.f32 %v1329, %v1368
  %s1385 = scalar_lea.vmem %s9, 5
  %v1386 = vld [vmem:[%s1385] ss:$8 sm:$0xf]
  %v1388 = vlaneseq
  %v1389 = vshrl.u32 %v1388, 7
  %v1390 = vsub.s32 0, %v1389
  %v1391 = vrot.slane %v1386, %v1390
  %v1392 = vlaneseq
  %v1393 = vshrl.u32 %v1392, 7
  %v1394 = vsub.s32 1, %v1393
  %v1395 = vrot.slane %v1386, %v1394
  %v1396 = vlaneseq
  %v1397 = vshrl.u32 %v1396, 7
  %v1398 = vsub.s32 2, %v1397
  %v1399 = vrot.slane %v1386, %v1398
  %v1400 = vlaneseq
  %v1401 = vshrl.u32 %v1400, 7
  %v1402 = vsub.s32 3, %v1401
  %v1403 = vrot.slane %v1386, %v1402
  %v1408 = vmul.f32 %v1127, %v1391
  %v1409 = vmul.f32 %v1128, %v1395
  %v1410 = vmul.f32 %v1129, %v1399
  %v1411 = vmul.f32 %v1130, %v1403
  %v1412 = vmul.f32 %v1131, %v1391
  %v1413 = vmul.f32 %v1132, %v1395
  %v1414 = vmul.f32 %v1133, %v1399
  %v1415 = vmul.f32 %v1134, %v1403
  %v1416 = vmul.f32 %v1135, %v1391
  %v1417 = vmul.f32 %v1136, %v1395
  %v1418 = vmul.f32 %v1137, %v1399
  %v1419 = vmul.f32 %v1138, %v1403
  %v1420 = vmul.f32 %v1139, %v1391
  %v1421 = vmul.f32 %v1140, %v1395
  %v1422 = vmul.f32 %v1141, %v1399
  %v1423 = vmul.f32 %v1142, %v1403
  %v1424 = vadd.f32 %v1369, %v1408
  %v1425 = vadd.f32 %v1370, %v1409
  %v1426 = vadd.f32 %v1371, %v1410
  %v1427 = vadd.f32 %v1372, %v1411
  %v1428 = vadd.f32 %v1373, %v1412
  %v1429 = vadd.f32 %v1374, %v1413
  %v1430 = vadd.f32 %v1375, %v1414
  %v1431 = vadd.f32 %v1376, %v1415
  %v1432 = vadd.f32 %v1377, %v1416
  %v1433 = vadd.f32 %v1378, %v1417
  %v1434 = vadd.f32 %v1379, %v1418
  %v1435 = vadd.f32 %v1380, %v1419
  %v1436 = vadd.f32 %v1381, %v1420
  %v1437 = vadd.f32 %v1382, %v1421
  %v1438 = vadd.f32 %v1383, %v1422
  %v1439 = vadd.f32 %v1384, %v1423
  %1440 = vmatprep.subr.mxu0 0.0
  %1441 = vmatpush1.msra.mxu0 0.0
  %1442 = vmatprep.subr.mxu0 0.0
  %1443 = vmatpush1.msra.mxu0 0.0
  %1444 = vmatprep.subr.mxu0 0.0
  %1445 = vmatpush1.msra.mxu0 0.0
  %1446 = vmatprep.subr.mxu0 0.0
  %1447 = vmatpush1.msra.mxu0 0.0
  %1448 = vmatprep.subr.mxu0 0.0
  %1449 = vmatpush1.msra.mxu0 0.0
  %1450 = vmatprep.subr.mxu0 0.0
  %1451 = vmatpush1.msra.mxu0 0.0
  %1452 = vmatprep.subr.mxu0 0.0
  %1453 = vmatpush1.msra.mxu0 0.0
  %1454 = vmatprep.subr.mxu0 0.0
  %1455 = vmatpush1.msra.mxu0 0.0
  %1456 = vmatprep.subr.mxu0 0.0
  %1457 = vmatpush1.msra.mxu0 0.0
  %1458 = vmatprep.subr.mxu0 0.0
  %1459 = vmatpush1.msra.mxu0 0.0
  %1460 = vmatprep.subr.mxu0 0.0
  %1461 = vmatpush1.msra.mxu0 0.0
  %1462 = vmatprep.subr.mxu0 0.0
  %1463 = vmatpush1.msra.mxu0 0.0
  %1464 = vmatprep.subr.mxu0 %v1288
  %1465 = vmatpush1.msra.mxu0 %v1287
  %1466 = vmatprep.subr.mxu0 %v1284
  %1467 = vmatpush1.msra.mxu0 %v1283
  %1468 = vmatprep.subr.mxu0 %v1280
  %1469 = vmatpush1.msra.mxu0 %v1279
  %1470 = vmatprep.subr.mxu0 %v1276
  %1471 = vmatpush1.msra.mxu0 %v1275
  %1472 = vmatprep.subr.mxu0 0.0
  %1473 = vmatpush2.msra.mxu0 0.0
  %1474 = vmatprep.subr.mxu0 0.0
  %1475 = vmatpush2.msra.mxu0 0.0
  %1476 = vmatprep.subr.mxu0 0.0
  %1477 = vmatpush2.msra.mxu0 0.0
  %1478 = vmatprep.subr.mxu0 0.0
  %1479 = vmatpush2.msra.mxu0 0.0
  %1480 = vmatprep.subr.mxu0 0.0
  %1481 = vmatpush2.msra.mxu0 0.0
  %1482 = vmatprep.subr.mxu0 0.0
  %1483 = vmatpush2.msra.mxu0 0.0
  %1484 = vmatprep.subr.mxu0 0.0
  %1485 = vmatpush2.msra.mxu0 0.0
  %1486 = vmatprep.subr.mxu0 0.0
  %1487 = vmatpush2.msra.mxu0 0.0
  %1488 = vmatprep.subr.mxu0 0.0
  %1489 = vmatpush2.msra.mxu0 0.0
  %1490 = vmatprep.subr.mxu0 0.0
  %1491 = vmatpush2.msra.mxu0 0.0
  %1492 = vmatprep.subr.mxu0 0.0
  %1493 = vmatpush2.msra.mxu0 0.0
  %1494 = vmatprep.subr.mxu0 0.0
  %1495 = vmatpush2.msra.mxu0 0.0
  %1496 = vmatprep.subr.mxu0 0.0
  %1497 = vmatpush2.msra.mxu0 0.0
  %1498 = vmatprep.subr.mxu0 0.0
  %1499 = vmatpush2.msra.mxu0 0.0
  %1500 = vmatprep.subr.mxu0 0.0
  %1501 = vmatpush2.msra.mxu0 0.0
  %1502 = vmatprep.subr.mxu0 0.0
  %1503 = vmatpush2.msra.mxu0 0.0
  %1504 = vmatprep.mubr.f32.mxu0 0.0
  %1505 = vmatmul.mubr.f32.gmra.mxu0 %v167
  %v1506 = vpop.f32.mrf.mxu0
  %v1507 = vadd.f32 %v1424, %v1506
  %v1508 = vpop.f32.mrf.mxu0
  %v1509 = vadd.f32 %v1425, %v1508
  %1510 = vmatprep.mubr.f32.mxu0 0.0
  %1511 = vmatmul.mubr.f32.gmra.mxu0 %v170
  %v1512 = vpop.f32.mrf.mxu0
  %v1513 = vadd.f32 %v1428, %v1512
  %v1514 = vpop.f32.mrf.mxu0
  %v1515 = vadd.f32 %v1429, %v1514
  %1516 = vmatprep.mubr.f32.mxu0 0.0
  %1517 = vmatmul.mubr.f32.gmra.mxu0 %v173
  %v1518 = vpop.f32.mrf.mxu0
  %v1519 = vadd.f32 %v1432, %v1518
  %v1520 = vpop.f32.mrf.mxu0
  %v1521 = vadd.f32 %v1433, %v1520
  %1522 = vmatprep.mubr.f32.mxu0 0.0
  %1523 = vmatmul.mubr.f32.gmra.mxu0 %v176
  %v1524 = vpop.f32.mrf.mxu0
  %v1525 = vadd.f32 %v1436, %v1524
  %v1526 = vpop.f32.mrf.mxu0
  %v1527 = vadd.f32 %v1437, %v1526
  %1528 = vdwg.mxu0
  %1529 = vmatprep.subr.mxu0 0.0
  %1530 = vmatpush1.msra.mxu0 0.0
  %1531 = vmatprep.subr.mxu0 0.0
  %1532 = vmatpush1.msra.mxu0 0.0
  %1533 = vmatprep.subr.mxu0 0.0
  %1534 = vmatpush1.msra.mxu0 0.0
  %1535 = vmatprep.subr.mxu0 0.0
  %1536 = vmatpush1.msra.mxu0 0.0
  %1537 = vmatprep.subr.mxu0 0.0
  %1538 = vmatpush1.msra.mxu0 0.0
  %1539 = vmatprep.subr.mxu0 0.0
  %1540 = vmatpush1.msra.mxu0 0.0
  %1541 = vmatprep.subr.mxu0 0.0
  %1542 = vmatpush1.msra.mxu0 0.0
  %1543 = vmatprep.subr.mxu0 0.0
  %1544 = vmatpush1.msra.mxu0 0.0
  %1545 = vmatprep.subr.mxu0 0.0
  %1546 = vmatpush1.msra.mxu0 0.0
  %1547 = vmatprep.subr.mxu0 0.0
  %1548 = vmatpush1.msra.mxu0 0.0
  %1549 = vmatprep.subr.mxu0 0.0
  %1550 = vmatpush1.msra.mxu0 0.0
  %1551 = vmatprep.subr.mxu0 0.0
  %1552 = vmatpush1.msra.mxu0 0.0
  %1553 = vmatprep.subr.mxu0 %v1290
  %1554 = vmatpush1.msra.mxu0 %v1289
  %1555 = vmatprep.subr.mxu0 %v1286
  %1556 = vmatpush1.msra.mxu0 %v1285
  %1557 = vmatprep.subr.mxu0 %v1282
  %1558 = vmatpush1.msra.mxu0 %v1281
  %1559 = vmatprep.subr.mxu0 %v1278
  %1560 = vmatpush1.msra.mxu0 %v1277
  %1561 = vmatprep.subr.mxu0 0.0
  %1562 = vmatpush2.msra.mxu0 0.0
  %1563 = vmatprep.subr.mxu0 0.0
  %1564 = vmatpush2.msra.mxu0 0.0
  %1565 = vmatprep.subr.mxu0 0.0
  %1566 = vmatpush2.msra.mxu0 0.0
  %1567 = vmatprep.subr.mxu0 0.0
  %1568 = vmatpush2.msra.mxu0 0.0
  %1569 = vmatprep.subr.mxu0 0.0
  %1570 = vmatpush2.msra.mxu0 0.0
  %1571 = vmatprep.subr.mxu0 0.0
  %1572 = vmatpush2.msra.mxu0 0.0
  %1573 = vmatprep.subr.mxu0 0.0
  %1574 = vmatpush2.msra.mxu0 0.0
  %1575 = vmatprep.subr.mxu0 0.0
  %1576 = vmatpush2.msra.mxu0 0.0
  %1577 = vmatprep.subr.mxu0 0.0
  %1578 = vmatpush2.msra.mxu0 0.0
  %1579 = vmatprep.subr.mxu0 0.0
  %1580 = vmatpush2.msra.mxu0 0.0
  %1581 = vmatprep.subr.mxu0 0.0
  %1582 = vmatpush2.msra.mxu0 0.0
  %1583 = vmatprep.subr.mxu0 0.0
  %1584 = vmatpush2.msra.mxu0 0.0
  %1585 = vmatprep.subr.mxu0 0.0
  %1586 = vmatpush2.msra.mxu0 0.0
  %1587 = vmatprep.subr.mxu0 0.0
  %1588 = vmatpush2.msra.mxu0 0.0
  %1589 = vmatprep.subr.mxu0 0.0
  %1590 = vmatpush2.msra.mxu0 0.0
  %1591 = vmatprep.subr.mxu0 0.0
  %1592 = vmatpush2.msra.mxu0 0.0
  %1593 = vmatprep.mubr.f32.mxu0 0.0
  %1594 = vmatmul.mubr.f32.gmra.mxu0 %v167
  %v1595 = vpop.f32.mrf.mxu0
  %v1596 = vadd.f32 %v1426, %v1595
  %v1597 = vpop.f32.mrf.mxu0
  %v1598 = vadd.f32 %v1427, %v1597
  %1599 = vmatprep.mubr.f32.mxu0 0.0
  %1600 = vmatmul.mubr.f32.gmra.mxu0 %v170
  %v1601 = vpop.f32.mrf.mxu0
  %v1602 = vadd.f32 %v1430, %v1601
  %v1603 = vpop.f32.mrf.mxu0
  %v1604 = vadd.f32 %v1431, %v1603
  %1605 = vmatprep.mubr.f32.mxu0 0.0
  %1606 = vmatmul.mubr.f32.gmra.mxu0 %v173
  %v1607 = vpop.f32.mrf.mxu0
  %v1608 = vadd.f32 %v1434, %v1607
  %v1609 = vpop.f32.mrf.mxu0
  %v1610 = vadd.f32 %v1435, %v1609
  %1611 = vmatprep.mubr.f32.mxu0 0.0
  %1612 = vmatmul.mubr.f32.gmra.mxu0 %v176
  %v1613 = vpop.f32.mrf.mxu0
  %v1614 = vadd.f32 %v1438, %v1613
  %v1615 = vpop.f32.mrf.mxu0
  %v1616 = vadd.f32 %v1439, %v1615
  %1617 = vdwg.mxu0
  %s1618 = scalar_lea.vmem %s9, 7
  %v1619 = vld [vmem:[%s1618] ss:$8 sm:$0xf]
  %v1621 = vlaneseq
  %v1622 = vshrl.u32 %v1621, 7
  %v1623 = vsub.s32 0, %v1622
  %v1624 = vrot.slane %v1619, %v1623
  %v1625 = vlaneseq
  %v1626 = vshrl.u32 %v1625, 7
  %v1627 = vsub.s32 1, %v1626
  %v1628 = vrot.slane %v1619, %v1627
  %v1629 = vlaneseq
  %v1630 = vshrl.u32 %v1629, 7
  %v1631 = vsub.s32 2, %v1630
  %v1632 = vrot.slane %v1619, %v1631
  %v1633 = vlaneseq
  %v1634 = vshrl.u32 %v1633, 7
  %v1635 = vsub.s32 3, %v1634
  %v1636 = vrot.slane %v1619, %v1635
  %v1641 = vmul.f32 %v810, %v1624
  %v1642 = vmul.f32 %v812, %v1628
  %v1643 = vmul.f32 %v899, %v1632
  %v1644 = vmul.f32 %v901, %v1636
  %v1645 = vmul.f32 %v816, %v1624
  %v1646 = vmul.f32 %v818, %v1628
  %v1647 = vmul.f32 %v905, %v1632
  %v1648 = vmul.f32 %v907, %v1636
  %v1649 = vmul.f32 %v822, %v1624
  %v1650 = vmul.f32 %v824, %v1628
  %v1651 = vmul.f32 %v911, %v1632
  %v1652 = vmul.f32 %v913, %v1636
  %v1653 = vmul.f32 %v828, %v1624
  %v1654 = vmul.f32 %v830, %v1628
  %v1655 = vmul.f32 %v917, %v1632
  %v1656 = vmul.f32 %v919, %v1636
  %s1657 = scalar_lea.vmem %s9, 6
  %v1658 = vld [vmem:[%s1657] ss:$8 sm:$0xf]
  %v1660 = vlaneseq
  %v1661 = vshrl.u32 %v1660, 7
  %v1662 = vsub.s32 0, %v1661
  %v1663 = vrot.slane %v1658, %v1662
  %v1664 = vlaneseq
  %v1665 = vshrl.u32 %v1664, 7
  %v1666 = vsub.s32 1, %v1665
  %v1667 = vrot.slane %v1658, %v1666
  %v1668 = vlaneseq
  %v1669 = vshrl.u32 %v1668, 7
  %v1670 = vsub.s32 2, %v1669
  %v1671 = vrot.slane %v1658, %v1670
  %v1672 = vlaneseq
  %v1673 = vshrl.u32 %v1672, 7
  %v1674 = vsub.s32 3, %v1673
  %v1675 = vrot.slane %v1658, %v1674
  %v1680 = vmul.f32 %v1090, %v1663
  %v1681 = vmul.f32 %v1091, %v1667
  %v1682 = vmul.f32 %v1092, %v1671
  %v1683 = vmul.f32 %v1093, %v1675
  %v1684 = vmul.f32 %v1094, %v1663
  %v1685 = vmul.f32 %v1095, %v1667
  %v1686 = vmul.f32 %v1096, %v1671
  %v1687 = vmul.f32 %v1097, %v1675
  %v1688 = vmul.f32 %v1098, %v1663
  %v1689 = vmul.f32 %v1099, %v1667
  %v1690 = vmul.f32 %v1100, %v1671
  %v1691 = vmul.f32 %v1101, %v1675
  %v1692 = vmul.f32 %v1102, %v1663
  %v1693 = vmul.f32 %v1103, %v1667
  %v1694 = vmul.f32 %v1104, %v1671
  %v1695 = vmul.f32 %v1105, %v1675
  %v1696 = vadd.f32 %v1641, %v1680
  %v1697 = vadd.f32 %v1642, %v1681
  %v1698 = vadd.f32 %v1643, %v1682
  %v1699 = vadd.f32 %v1644, %v1683
  %v1700 = vadd.f32 %v1645, %v1684
  %v1701 = vadd.f32 %v1646, %v1685
  %v1702 = vadd.f32 %v1647, %v1686
  %v1703 = vadd.f32 %v1648, %v1687
  %v1704 = vadd.f32 %v1649, %v1688
  %v1705 = vadd.f32 %v1650, %v1689
  %v1706 = vadd.f32 %v1651, %v1690
  %v1707 = vadd.f32 %v1652, %v1691
  %v1708 = vadd.f32 %v1653, %v1692
  %v1709 = vadd.f32 %v1654, %v1693
  %v1710 = vadd.f32 %v1655, %v1694
  %v1711 = vadd.f32 %v1656, %v1695
  %s1712 = scalar_lea.vmem %s9, 32
  %v1713 = vld [vmem:[%s1712] ss:$8 sm:$0xf]
  %v1715 = vlaneseq
  %v1716 = vshrl.u32 %v1715, 7
  %v1717 = vsub.s32 0, %v1716
  %v1718 = vrot.slane %v1713, %v1717
  %v1719 = vlaneseq
  %v1720 = vshrl.u32 %v1719, 7
  %v1721 = vsub.s32 1, %v1720
  %v1722 = vrot.slane %v1713, %v1721
  %v1723 = vlaneseq
  %v1724 = vshrl.u32 %v1723, 7
  %v1725 = vsub.s32 2, %v1724
  %v1726 = vrot.slane %v1713, %v1725
  %v1727 = vlaneseq
  %v1728 = vshrl.u32 %v1727, 7
  %v1729 = vsub.s32 3, %v1728
  %v1730 = vrot.slane %v1713, %v1729
  %v1735 = vmul.f32 %v1127, %v1718
  %v1736 = vmul.f32 %v1128, %v1722
  %v1737 = vmul.f32 %v1129, %v1726
  %v1738 = vmul.f32 %v1130, %v1730
  %v1739 = vmul.f32 %v1131, %v1718
  %v1740 = vmul.f32 %v1132, %v1722
  %v1741 = vmul.f32 %v1133, %v1726
  %v1742 = vmul.f32 %v1134, %v1730
  %v1743 = vmul.f32 %v1135, %v1718
  %v1744 = vmul.f32 %v1136, %v1722
  %v1745 = vmul.f32 %v1137, %v1726
  %v1746 = vmul.f32 %v1138, %v1730
  %v1747 = vmul.f32 %v1139, %v1718
  %v1748 = vmul.f32 %v1140, %v1722
  %v1749 = vmul.f32 %v1141, %v1726
  %v1750 = vmul.f32 %v1142, %v1730
  %v1751 = vadd.f32 %v1696, %v1735
  %v1752 = vadd.f32 %v1697, %v1736
  %v1753 = vadd.f32 %v1698, %v1737
  %v1754 = vadd.f32 %v1699, %v1738
  %v1755 = vadd.f32 %v1700, %v1739
  %v1756 = vadd.f32 %v1701, %v1740
  %v1757 = vadd.f32 %v1702, %v1741
  %v1758 = vadd.f32 %v1703, %v1742
  %v1759 = vadd.f32 %v1704, %v1743
  %v1760 = vadd.f32 %v1705, %v1744
  %v1761 = vadd.f32 %v1706, %v1745
  %v1762 = vadd.f32 %v1707, %v1746
  %v1763 = vadd.f32 %v1708, %v1747
  %v1764 = vadd.f32 %v1709, %v1748
  %v1765 = vadd.f32 %v1710, %v1749
  %v1766 = vadd.f32 %v1711, %v1750
  %1767 = vmatprep.subr.mxu0 0.0
  %1768 = vmatpush1.msra.mxu0 0.0
  %1769 = vmatprep.subr.mxu0 0.0
  %1770 = vmatpush1.msra.mxu0 0.0
  %1771 = vmatprep.subr.mxu0 0.0
  %1772 = vmatpush1.msra.mxu0 0.0
  %1773 = vmatprep.subr.mxu0 0.0
  %1774 = vmatpush1.msra.mxu0 0.0
  %1775 = vmatprep.subr.mxu0 0.0
  %1776 = vmatpush1.msra.mxu0 0.0
  %1777 = vmatprep.subr.mxu0 0.0
  %1778 = vmatpush1.msra.mxu0 0.0
  %1779 = vmatprep.subr.mxu0 0.0
  %1780 = vmatpush1.msra.mxu0 0.0
  %1781 = vmatprep.subr.mxu0 0.0
  %1782 = vmatpush1.msra.mxu0 0.0
  %1783 = vmatprep.subr.mxu0 0.0
  %1784 = vmatpush1.msra.mxu0 0.0
  %1785 = vmatprep.subr.mxu0 0.0
  %1786 = vmatpush1.msra.mxu0 0.0
  %1787 = vmatprep.subr.mxu0 0.0
  %1788 = vmatpush1.msra.mxu0 0.0
  %1789 = vmatprep.subr.mxu0 0.0
  %1790 = vmatpush1.msra.mxu0 0.0
  %1791 = vmatprep.subr.mxu0 %v1764
  %1792 = vmatpush1.msra.mxu0 %v1763
  %1793 = vmatprep.subr.mxu0 %v1760
  %1794 = vmatpush1.msra.mxu0 %v1759
  %1795 = vmatprep.subr.mxu0 %v1756
  %1796 = vmatpush1.msra.mxu0 %v1755
  %1797 = vmatprep.subr.mxu0 %v1752
  %1798 = vmatpush1.msra.mxu0 %v1751
  %1799 = vmatprep.subr.mxu0 0.0
  %1800 = vmatpush2.msra.mxu0 0.0
  %1801 = vmatprep.subr.mxu0 0.0
  %1802 = vmatpush2.msra.mxu0 0.0
  %1803 = vmatprep.subr.mxu0 0.0
  %1804 = vmatpush2.msra.mxu0 0.0
  %1805 = vmatprep.subr.mxu0 0.0
  %1806 = vmatpush2.msra.mxu0 0.0
  %1807 = vmatprep.subr.mxu0 0.0
  %1808 = vmatpush2.msra.mxu0 0.0
  %1809 = vmatprep.subr.mxu0 0.0
  %1810 = vmatpush2.msra.mxu0 0.0
  %1811 = vmatprep.subr.mxu0 0.0
  %1812 = vmatpush2.msra.mxu0 0.0
  %1813 = vmatprep.subr.mxu0 0.0
  %1814 = vmatpush2.msra.mxu0 0.0
  %1815 = vmatprep.subr.mxu0 0.0
  %1816 = vmatpush2.msra.mxu0 0.0
  %1817 = vmatprep.subr.mxu0 0.0
  %1818 = vmatpush2.msra.mxu0 0.0
  %1819 = vmatprep.subr.mxu0 0.0
  %1820 = vmatpush2.msra.mxu0 0.0
  %1821 = vmatprep.subr.mxu0 0.0
  %1822 = vmatpush2.msra.mxu0 0.0
  %1823 = vmatprep.subr.mxu0 0.0
  %1824 = vmatpush2.msra.mxu0 0.0
  %1825 = vmatprep.subr.mxu0 0.0
  %1826 = vmatpush2.msra.mxu0 0.0
  %1827 = vmatprep.subr.mxu0 0.0
  %1828 = vmatpush2.msra.mxu0 0.0
  %1829 = vmatprep.subr.mxu0 0.0
  %1830 = vmatpush2.msra.mxu0 0.0
  %1831 = vmatprep.mubr.f32.mxu0 0.0
  %1832 = vmatmul.mubr.f32.gmra.mxu0 %v299
  %v1833 = vpop.f32.mrf.mxu0
  %v1834 = vadd.f32 0.0, %v1833
  %v1835 = vpop.f32.mrf.mxu0
  %v1836 = vadd.f32 0.0, %v1835
  %1837 = vmatprep.mubr.f32.mxu0 0.0
  %1838 = vmatmul.mubr.f32.gmra.mxu0 %v302
  %v1839 = vpop.f32.mrf.mxu0
  %v1840 = vadd.f32 0.0, %v1839
  %v1841 = vpop.f32.mrf.mxu0
  %v1842 = vadd.f32 0.0, %v1841
  %1843 = vmatprep.mubr.f32.mxu0 0.0
  %1844 = vmatmul.mubr.f32.gmra.mxu0 %v305
  %v1845 = vpop.f32.mrf.mxu0
  %v1846 = vadd.f32 0.0, %v1845
  %v1847 = vpop.f32.mrf.mxu0
  %v1848 = vadd.f32 0.0, %v1847
  %1849 = vmatprep.mubr.f32.mxu0 0.0
  %1850 = vmatmul.mubr.f32.gmra.mxu0 %v308
  %v1851 = vpop.f32.mrf.mxu0
  %v1852 = vadd.f32 0.0, %v1851
  %v1853 = vpop.f32.mrf.mxu0
  %v1854 = vadd.f32 0.0, %v1853
  %1855 = vdwg.mxu0
  %1856 = vmatprep.subr.mxu0 0.0
  %1857 = vmatpush1.msra.mxu0 0.0
  %1858 = vmatprep.subr.mxu0 0.0
  %1859 = vmatpush1.msra.mxu0 0.0
  %1860 = vmatprep.subr.mxu0 0.0
  %1861 = vmatpush1.msra.mxu0 0.0
  %1862 = vmatprep.subr.mxu0 0.0
  %1863 = vmatpush1.msra.mxu0 0.0
  %1864 = vmatprep.subr.mxu0 0.0
  %1865 = vmatpush1.msra.mxu0 0.0
  %1866 = vmatprep.subr.mxu0 0.0
  %1867 = vmatpush1.msra.mxu0 0.0
  %1868 = vmatprep.subr.mxu0 0.0
  %1869 = vmatpush1.msra.mxu0 0.0
  %1870 = vmatprep.subr.mxu0 0.0
  %1871 = vmatpush1.msra.mxu0 0.0
  %1872 = vmatprep.subr.mxu0 0.0
  %1873 = vmatpush1.msra.mxu0 0.0
  %1874 = vmatprep.subr.mxu0 0.0
  %1875 = vmatpush1.msra.mxu0 0.0
  %1876 = vmatprep.subr.mxu0 0.0
  %1877 = vmatpush1.msra.mxu0 0.0
  %1878 = vmatprep.subr.mxu0 0.0
  %1879 = vmatpush1.msra.mxu0 0.0
  %1880 = vmatprep.subr.mxu0 %v1766
  %1881 = vmatpush1.msra.mxu0 %v1765
  %1882 = vmatprep.subr.mxu0 %v1762
  %1883 = vmatpush1.msra.mxu0 %v1761
  %1884 = vmatprep.subr.mxu0 %v1758
  %1885 = vmatpush1.msra.mxu0 %v1757
  %1886 = vmatprep.subr.mxu0 %v1754
  %1887 = vmatpush1.msra.mxu0 %v1753
  %1888 = vmatprep.subr.mxu0 0.0
  %1889 = vmatpush2.msra.mxu0 0.0
  %1890 = vmatprep.subr.mxu0 0.0
  %1891 = vmatpush2.msra.mxu0 0.0
  %1892 = vmatprep.subr.mxu0 0.0
  %1893 = vmatpush2.msra.mxu0 0.0
  %1894 = vmatprep.subr.mxu0 0.0
  %1895 = vmatpush2.msra.mxu0 0.0
  %1896 = vmatprep.subr.mxu0 0.0
  %1897 = vmatpush2.msra.mxu0 0.0
  %1898 = vmatprep.subr.mxu0 0.0
  %1899 = vmatpush2.msra.mxu0 0.0
  %1900 = vmatprep.subr.mxu0 0.0
  %1901 = vmatpush2.msra.mxu0 0.0
  %1902 = vmatprep.subr.mxu0 0.0
  %1903 = vmatpush2.msra.mxu0 0.0
  %1904 = vmatprep.subr.mxu0 0.0
  %1905 = vmatpush2.msra.mxu0 0.0
  %1906 = vmatprep.subr.mxu0 0.0
  %1907 = vmatpush2.msra.mxu0 0.0
  %1908 = vmatprep.subr.mxu0 0.0
  %1909 = vmatpush2.msra.mxu0 0.0
  %1910 = vmatprep.subr.mxu0 0.0
  %1911 = vmatpush2.msra.mxu0 0.0
  %1912 = vmatprep.subr.mxu0 0.0
  %1913 = vmatpush2.msra.mxu0 0.0
  %1914 = vmatprep.subr.mxu0 0.0
  %1915 = vmatpush2.msra.mxu0 0.0
  %1916 = vmatprep.subr.mxu0 0.0
  %1917 = vmatpush2.msra.mxu0 0.0
  %1918 = vmatprep.subr.mxu0 0.0
  %1919 = vmatpush2.msra.mxu0 0.0
  %1920 = vmatprep.mubr.f32.mxu0 0.0
  %1921 = vmatmul.mubr.f32.gmra.mxu0 %v299
  %v1922 = vpop.f32.mrf.mxu0
  %v1923 = vadd.f32 0.0, %v1922
  %v1924 = vpop.f32.mrf.mxu0
  %v1925 = vadd.f32 0.0, %v1924
  %1926 = vmatprep.mubr.f32.mxu0 0.0
  %1927 = vmatmul.mubr.f32.gmra.mxu0 %v302
  %v1928 = vpop.f32.mrf.mxu0
  %v1929 = vadd.f32 0.0, %v1928
  %v1930 = vpop.f32.mrf.mxu0
  %v1931 = vadd.f32 0.0, %v1930
  %1932 = vmatprep.mubr.f32.mxu0 0.0
  %1933 = vmatmul.mubr.f32.gmra.mxu0 %v305
  %v1934 = vpop.f32.mrf.mxu0
  %v1935 = vadd.f32 0.0, %v1934
  %v1936 = vpop.f32.mrf.mxu0
  %v1937 = vadd.f32 0.0, %v1936
  %1938 = vmatprep.mubr.f32.mxu0 0.0
  %1939 = vmatmul.mubr.f32.gmra.mxu0 %v308
  %v1940 = vpop.f32.mrf.mxu0
  %v1941 = vadd.f32 0.0, %v1940
  %v1942 = vpop.f32.mrf.mxu0
  %v1943 = vadd.f32 0.0, %v1942
  %1944 = vdwg.mxu0
  %v1945 = vadd.f32 %v1507, %v1834
  %v1946 = vadd.f32 %v1509, %v1836
  %v1947 = vadd.f32 %v1596, %v1923
  %v1948 = vadd.f32 %v1598, %v1925
  %v1949 = vadd.f32 %v1513, %v1840
  %v1950 = vadd.f32 %v1515, %v1842
  %v1951 = vadd.f32 %v1602, %v1929
  %v1952 = vadd.f32 %v1604, %v1931
  %v1953 = vadd.f32 %v1519, %v1846
  %v1954 = vadd.f32 %v1521, %v1848
  %v1955 = vadd.f32 %v1608, %v1935
  %v1956 = vadd.f32 %v1610, %v1937
  %v1957 = vadd.f32 %v1525, %v1852
  %v1958 = vadd.f32 %v1527, %v1854
  %v1959 = vadd.f32 %v1614, %v1941
  %v1960 = vadd.f32 %v1616, %v1943
  %v1961 = vmul.f32 %v1945, 0.70710677
  %v1962 = vmul.f32 %v1946, 0.70710677
  %v1963 = vmul.f32 %v1949, 0.70710677
  %v1964 = vmul.f32 %v1950, 0.70710677
  %v1965 = vmul.f32 %v1953, 0.70710677
  %v1966 = vmul.f32 %v1954, 0.70710677
  %v1967 = vmul.f32 %v1957, 0.70710677
  %v1968 = vmul.f32 %v1958, 0.70710677
  %v1969 = vand.u32 2147483647, %v1961
  %v1970 = vand.u32 2147483647, %v1962
  %v1971 = vand.u32 2147483647, %v1963
  %v1972 = vand.u32 2147483647, %v1964
  %v1973 = vand.u32 2147483647, %v1965
  %v1974 = vand.u32 2147483647, %v1966
  %v1975 = vand.u32 2147483647, %v1967
  %v1976 = vand.u32 2147483647, %v1968
  %v1977 = vmul.f32 %v1969, 0.3275911
  %v1978 = vmul.f32 %v1970, 0.3275911
  %v1979 = vmul.f32 %v1971, 0.3275911
  %v1980 = vmul.f32 %v1972, 0.3275911
  %v1981 = vmul.f32 %v1973, 0.3275911
  %v1982 = vmul.f32 %v1974, 0.3275911
  %v1983 = vmul.f32 %v1975, 0.3275911
  %v1984 = vmul.f32 %v1976, 0.3275911
  %v1985 = vadd.f32 %v1977, 1.0
  %v1986 = vadd.f32 %v1978, 1.0
  %v1987 = vadd.f32 %v1979, 1.0
  %v1988 = vadd.f32 %v1980, 1.0
  %v1989 = vadd.f32 %v1981, 1.0
  %v1990 = vadd.f32 %v1982, 1.0
  %v1991 = vadd.f32 %v1983, 1.0
  %v1992 = vadd.f32 %v1984, 1.0
  %v1993 = vrcp.pop %v1985
  %v1994 = vmul.f32 1.0, %v1993
  %v1995 = vrcp.pop %v1986
  %v1996 = vmul.f32 1.0, %v1995
  %v1997 = vrcp.pop %v1987
  %v1998 = vmul.f32 1.0, %v1997
  %v1999 = vrcp.pop %v1988
  %v2000 = vmul.f32 1.0, %v1999
  %v2001 = vrcp.pop %v1989
  %v2002 = vmul.f32 1.0, %v2001
  %v2003 = vrcp.pop %v1990
  %v2004 = vmul.f32 1.0, %v2003
  %v2005 = vrcp.pop %v1991
  %v2006 = vmul.f32 1.0, %v2005
  %v2007 = vrcp.pop %v1992
  %v2008 = vmul.f32 1.0, %v2007
  %v2009 = vmul.f32 %v1994, 1.0614054
  %v2010 = vmul.f32 %v1996, 1.0614054
  %v2011 = vmul.f32 %v1998, 1.0614054
  %v2012 = vmul.f32 %v2000, 1.0614054
  %v2013 = vmul.f32 %v2002, 1.0614054
  %v2014 = vmul.f32 %v2004, 1.0614054
  %v2015 = vmul.f32 %v2006, 1.0614054
  %v2016 = vmul.f32 %v2008, 1.0614054
  %v2017 = vsub.f32 %v2009, 1.4531521
  %v2018 = vsub.f32 %v2010, 1.4531521
  %v2019 = vsub.f32 %v2011, 1.4531521
  %v2020 = vsub.f32 %v2012, 1.4531521
  %v2021 = vsub.f32 %v2013, 1.4531521
  %v2022 = vsub.f32 %v2014, 1.4531521
  %v2023 = vsub.f32 %v2015, 1.4531521
  %v2024 = vsub.f32 %v2016, 1.4531521
  %v2025 = vmul.f32 %v2017, %v1994
  %v2026 = vmul.f32 %v2018, %v1996
  %v2027 = vmul.f32 %v2019, %v1998
  %v2028 = vmul.f32 %v2020, %v2000
  %v2029 = vmul.f32 %v2021, %v2002
  %v2030 = vmul.f32 %v2022, %v2004
  %v2031 = vmul.f32 %v2023, %v2006
  %v2032 = vmul.f32 %v2024, %v2008
  %v2033 = vadd.f32 %v2025, 1.4214138
  %v2034 = vadd.f32 %v2026, 1.4214138
  %v2035 = vadd.f32 %v2027, 1.4214138
  %v2036 = vadd.f32 %v2028, 1.4214138
  %v2037 = vadd.f32 %v2029, 1.4214138
  %v2038 = vadd.f32 %v2030, 1.4214138
  %v2039 = vadd.f32 %v2031, 1.4214138
  %v2040 = vadd.f32 %v2032, 1.4214138
  %v2041 = vmul.f32 %v2033, %v1994
  %v2042 = vmul.f32 %v2034, %v1996
  %v2043 = vmul.f32 %v2035, %v1998
  %v2044 = vmul.f32 %v2036, %v2000
  %v2045 = vmul.f32 %v2037, %v2002
  %v2046 = vmul.f32 %v2038, %v2004
  %v2047 = vmul.f32 %v2039, %v2006
  %v2048 = vmul.f32 %v2040, %v2008
  %v2049 = vsub.f32 %v2041, 0.28449672
  %v2050 = vsub.f32 %v2042, 0.28449672
  %v2051 = vsub.f32 %v2043, 0.28449672
  %v2052 = vsub.f32 %v2044, 0.28449672
  %v2053 = vsub.f32 %v2045, 0.28449672
  %v2054 = vsub.f32 %v2046, 0.28449672
  %v2055 = vsub.f32 %v2047, 0.28449672
  %v2056 = vsub.f32 %v2048, 0.28449672
  %v2057 = vmul.f32 %v2049, %v1994
  %v2058 = vmul.f32 %v2050, %v1996
  %v2059 = vmul.f32 %v2051, %v1998
  %v2060 = vmul.f32 %v2052, %v2000
  %v2061 = vmul.f32 %v2053, %v2002
  %v2062 = vmul.f32 %v2054, %v2004
  %v2063 = vmul.f32 %v2055, %v2006
  %v2064 = vmul.f32 %v2056, %v2008
  %v2065 = vadd.f32 %v2057, 0.2548296
  %v2066 = vadd.f32 %v2058, 0.2548296
  %v2067 = vadd.f32 %v2059, 0.2548296
  %v2068 = vadd.f32 %v2060, 0.2548296
  %v2069 = vadd.f32 %v2061, 0.2548296
  %v2070 = vadd.f32 %v2062, 0.2548296
  %v2071 = vadd.f32 %v2063, 0.2548296
  %v2072 = vadd.f32 %v2064, 0.2548296
  %v2073 = vmul.f32 %v2065, %v1994
  %v2074 = vmul.f32 %v2066, %v1996
  %v2075 = vmul.f32 %v2067, %v1998
  %v2076 = vmul.f32 %v2068, %v2000
  %v2077 = vmul.f32 %v2069, %v2002
  %v2078 = vmul.f32 %v2070, %v2004
  %v2079 = vmul.f32 %v2071, %v2006
  %v2080 = vmul.f32 %v2072, %v2008
  %v2081 = vsub.f32 0.0, %v1969
  %v2082 = vsub.f32 0.0, %v1970
  %v2083 = vsub.f32 0.0, %v1971
  %v2084 = vsub.f32 0.0, %v1972
  %v2085 = vsub.f32 0.0, %v1973
  %v2086 = vsub.f32 0.0, %v1974
  %v2087 = vsub.f32 0.0, %v1975
  %v2088 = vsub.f32 0.0, %v1976
  %v2089 = vmul.f32 %v2081, %v1969
  %v2090 = vmul.f32 %v2082, %v1970
  %v2091 = vmul.f32 %v2083, %v1971
  %v2092 = vmul.f32 %v2084, %v1972
  %v2093 = vmul.f32 %v2085, %v1973
  %v2094 = vmul.f32 %v2086, %v1974
  %v2095 = vmul.f32 %v2087, %v1975
  %v2096 = vmul.f32 %v2088, %v1976
  %v2097 = vmul.f32 %v2089, 1.442695
  %v2098 = vpow.pop %v2097
  %v2099 = vmul.f32 %v2090, 1.442695
  %v2100 = vpow.pop %v2099
  %v2101 = vmul.f32 %v2091, 1.442695
  %v2102 = vpow.pop %v2101
  %v2103 = vmul.f32 %v2092, 1.442695
  %v2104 = vpow.pop %v2103
  %v2105 = vmul.f32 %v2093, 1.442695
  %v2106 = vpow.pop %v2105
  %v2107 = vmul.f32 %v2094, 1.442695
  %v2108 = vpow.pop %v2107
  %v2109 = vmul.f32 %v2095, 1.442695
  %v2110 = vpow.pop %v2109
  %v2111 = vmul.f32 %v2096, 1.442695
  %v2112 = vpow.pop %v2111
  %v2113 = vmul.f32 %v2073, %v2098
  %v2114 = vmul.f32 %v2074, %v2100
  %v2115 = vmul.f32 %v2075, %v2102
  %v2116 = vmul.f32 %v2076, %v2104
  %v2117 = vmul.f32 %v2077, %v2106
  %v2118 = vmul.f32 %v2078, %v2108
  %v2119 = vmul.f32 %v2079, %v2110
  %v2120 = vmul.f32 %v2080, %v2112
  %v2121 = vsub.f32 1.0, %v2113
  %v2122 = vsub.f32 1.0, %v2114
  %v2123 = vsub.f32 1.0, %v2115
  %v2124 = vsub.f32 1.0, %v2116
  %v2125 = vsub.f32 1.0, %v2117
  %v2126 = vsub.f32 1.0, %v2118
  %v2127 = vsub.f32 1.0, %v2119
  %v2128 = vsub.f32 1.0, %v2120
  %vm2129 = vcmp.lt.f32.partialorder %v1961, 0.0
  %vm2130 = vcmp.lt.f32.partialorder %v1962, 0.0
  %vm2131 = vcmp.lt.f32.partialorder %v1963, 0.0
  %vm2132 = vcmp.lt.f32.partialorder %v1964, 0.0
  %vm2133 = vcmp.lt.f32.partialorder %v1965, 0.0
  %vm2134 = vcmp.lt.f32.partialorder %v1966, 0.0
  %vm2135 = vcmp.lt.f32.partialorder %v1967, 0.0
  %vm2136 = vcmp.lt.f32.partialorder %v1968, 0.0
  %v2137 = vsub.f32 0.0, %v2121
  %v2138 = vsub.f32 0.0, %v2122
  %v2139 = vsub.f32 0.0, %v2123
  %v2140 = vsub.f32 0.0, %v2124
  %v2141 = vsub.f32 0.0, %v2125
  %v2142 = vsub.f32 0.0, %v2126
  %v2143 = vsub.f32 0.0, %v2127
  %v2144 = vsub.f32 0.0, %v2128
  %v2145 = vsel %vm2129, %v2137, %v2121
  %v2146 = vsel %vm2130, %v2138, %v2122
  %v2147 = vsel %vm2131, %v2139, %v2123
  %v2148 = vsel %vm2132, %v2140, %v2124
  %v2149 = vsel %vm2133, %v2141, %v2125
  %v2150 = vsel %vm2134, %v2142, %v2126
  %v2151 = vsel %vm2135, %v2143, %v2127
  %v2152 = vsel %vm2136, %v2144, %v2128
  %v2153 = vmul.f32 %v1945, 0.5
  %v2154 = vmul.f32 %v1946, 0.5
  %v2155 = vmul.f32 %v1949, 0.5
  %v2156 = vmul.f32 %v1950, 0.5
  %v2157 = vmul.f32 %v1953, 0.5
  %v2158 = vmul.f32 %v1954, 0.5
  %v2159 = vmul.f32 %v1957, 0.5
  %v2160 = vmul.f32 %v1958, 0.5
  %v2161 = vadd.f32 %v2145, 1.0
  %v2162 = vadd.f32 %v2146, 1.0
  %v2163 = vadd.f32 %v2147, 1.0
  %v2164 = vadd.f32 %v2148, 1.0
  %v2165 = vadd.f32 %v2149, 1.0
  %v2166 = vadd.f32 %v2150, 1.0
  %v2167 = vadd.f32 %v2151, 1.0
  %v2168 = vadd.f32 %v2152, 1.0
  %v2169 = vmul.f32 %v2153, %v2161
  %v2170 = vmul.f32 %v2154, %v2162
  %v2171 = vmul.f32 %v2155, %v2163
  %v2172 = vmul.f32 %v2156, %v2164
  %v2173 = vmul.f32 %v2157, %v2165
  %v2174 = vmul.f32 %v2158, %v2166
  %v2175 = vmul.f32 %v2159, %v2167
  %v2176 = vmul.f32 %v2160, %v2168
  %v2177 = vmul.f32 %v2169, %v1947
  %v2178 = vmul.f32 %v2170, %v1948
  %v2179 = vmul.f32 %v2171, %v1951
  %v2180 = vmul.f32 %v2172, %v1952
  %v2181 = vmul.f32 %v2173, %v1955
  %v2182 = vmul.f32 %v2174, %v1956
  %v2183 = vmul.f32 %v2175, %v1959
  %v2184 = vmul.f32 %v2176, %v1960
  %v2185 = vld [vmem:[%s12] sm:$0xff]
  %v2186 = vld [vmem:[%s12 + $0x8] sm:$0xff]
  %v2187 = vld [vmem:[%s12 + $0x10] sm:$0xff]
  %v2188 = vld [vmem:[%s12 + $0x18] sm:$0xff]
  %v2189 = vld [vmem:[%s12 + $0x20] sm:$0xff]
  %v2190 = vld [vmem:[%s12 + $0x28] sm:$0xff]
  %v2191 = vld [vmem:[%s12 + $0x30] sm:$0xff]
  %v2192 = vld [vmem:[%s12 + $0x38] sm:$0xff]
  %v2193 = vld [vmem:[%s12 + $0x40] sm:$0xff]
  %v2194 = vld [vmem:[%s12 + $0x48] sm:$0xff]
  %v2195 = vld [vmem:[%s12 + $0x50] sm:$0xff]
  %v2196 = vld [vmem:[%s12 + $0x58] sm:$0xff]
  %v2197 = vld [vmem:[%s12 + $0x60] sm:$0xff]
  %v2198 = vld [vmem:[%s12 + $0x68] sm:$0xff]
  %v2199 = vld [vmem:[%s12 + $0x70] sm:$0xff]
  %v2200 = vld [vmem:[%s12 + $0x78] sm:$0xff]
  %v2201 = vld [vmem:[%s12 + $0x80] sm:$0xff]
  %v2202 = vld [vmem:[%s12 + $0x88] sm:$0xff]
  %v2203 = vld [vmem:[%s12 + $0x90] sm:$0xff]
  %v2204 = vld [vmem:[%s12 + $0x98] sm:$0xff]
  %v2205 = vld [vmem:[%s12 + $0xa0] sm:$0xff]
  %v2206 = vld [vmem:[%s12 + $0xa8] sm:$0xff]
  %v2207 = vld [vmem:[%s12 + $0xb0] sm:$0xff]
  %v2208 = vld [vmem:[%s12 + $0xb8] sm:$0xff]
  %v2209 = vld [vmem:[%s12 + $0xc0] sm:$0xff]
  %v2210 = vld [vmem:[%s12 + $0xc8] sm:$0xff]
  %v2211 = vld [vmem:[%s12 + $0xd0] sm:$0xff]
  %v2212 = vld [vmem:[%s12 + $0xd8] sm:$0xff]
  %v2213 = vld [vmem:[%s12 + $0xe0] sm:$0xff]
  %v2214 = vld [vmem:[%s12 + $0xe8] sm:$0xff]
  %v2215 = vld [vmem:[%s12 + $0xf0] sm:$0xff]
  %v2216 = vld [vmem:[%s12 + $0xf8] sm:$0xff]
  %2217 = vmatprep.subr.mxu0 0.0
  %2218 = vmatpush1.msra.mxu0 %v2200
  %2219 = vmatprep.subr.mxu0 0.0
  %2220 = vmatpush1.msra.mxu0 %v2199
  %2221 = vmatprep.subr.mxu0 0.0
  %2222 = vmatpush1.msra.mxu0 %v2198
  %2223 = vmatprep.subr.mxu0 0.0
  %2224 = vmatpush1.msra.mxu0 %v2197
  %2225 = vmatprep.subr.mxu0 0.0
  %2226 = vmatpush1.msra.mxu0 %v2196
  %2227 = vmatprep.subr.mxu0 0.0
  %2228 = vmatpush1.msra.mxu0 %v2195
  %2229 = vmatprep.subr.mxu0 0.0
  %2230 = vmatpush1.msra.mxu0 %v2194
  %2231 = vmatprep.subr.mxu0 0.0
  %2232 = vmatpush1.msra.mxu0 %v2193
  %2233 = vmatprep.subr.mxu0 0.0
  %2234 = vmatpush1.msra.mxu0 %v2192
  %2235 = vmatprep.subr.mxu0 0.0
  %2236 = vmatpush1.msra.mxu0 %v2191
  %2237 = vmatprep.subr.mxu0 0.0
  %2238 = vmatpush1.msra.mxu0 %v2190
  %2239 = vmatprep.subr.mxu0 0.0
  %2240 = vmatpush1.msra.mxu0 %v2189
  %2241 = vmatprep.subr.mxu0 0.0
  %2242 = vmatpush1.msra.mxu0 %v2188
  %2243 = vmatprep.subr.mxu0 0.0
  %2244 = vmatpush1.msra.mxu0 %v2187
  %2245 = vmatprep.subr.mxu0 0.0
  %2246 = vmatpush1.msra.mxu0 %v2186
  %2247 = vmatprep.subr.mxu0 0.0
  %2248 = vmatpush1.msra.mxu0 %v2185
  %2249 = vmatprep.subr.mxu0 0.0
  %2250 = vmatpush2.msra.mxu0 %v2216
  %2251 = vmatprep.subr.mxu0 0.0
  %2252 = vmatpush2.msra.mxu0 %v2215
  %2253 = vmatprep.subr.mxu0 0.0
  %2254 = vmatpush2.msra.mxu0 %v2214
  %2255 = vmatprep.subr.mxu0 0.0
  %2256 = vmatpush2.msra.mxu0 %v2213
  %2257 = vmatprep.subr.mxu0 0.0
  %2258 = vmatpush2.msra.mxu0 %v2212
  %2259 = vmatprep.subr.mxu0 0.0
  %2260 = vmatpush2.msra.mxu0 %v2211
  %2261 = vmatprep.subr.mxu0 0.0
  %2262 = vmatpush2.msra.mxu0 %v2210
  %2263 = vmatprep.subr.mxu0 0.0
  %2264 = vmatpush2.msra.mxu0 %v2209
  %2265 = vmatprep.subr.mxu0 0.0
  %2266 = vmatpush2.msra.mxu0 %v2208
  %2267 = vmatprep.subr.mxu0 0.0
  %2268 = vmatpush2.msra.mxu0 %v2207
  %2269 = vmatprep.subr.mxu0 0.0
  %2270 = vmatpush2.msra.mxu0 %v2206
  %2271 = vmatprep.subr.mxu0 0.0
  %2272 = vmatpush2.msra.mxu0 %v2205
  %2273 = vmatprep.subr.mxu0 0.0
  %2274 = vmatpush2.msra.mxu0 %v2204
  %2275 = vmatprep.subr.mxu0 0.0
  %2276 = vmatpush2.msra.mxu0 %v2203
  %2277 = vmatprep.subr.mxu0 0.0
  %2278 = vmatpush2.msra.mxu0 %v2202
  %2279 = vmatprep.subr.mxu0 0.0
  %2280 = vmatpush2.msra.mxu0 %v2201
  %2281 = vmatprep.mubr.f32.mxu0 %v2178
  %2282 = vmatmul.mubr.f32.gmra.mxu0 %v2177
  %v2283 = vpop.f32.mrf.mxu0
  %v2284 = vadd.f32 0.0, %v2283
  %v2285 = vpop.f32.mrf.mxu0
  %2286 = vmatprep.mubr.f32.mxu0 %v2180
  %2287 = vmatmul.mubr.f32.gmra.mxu0 %v2179
  %v2288 = vpop.f32.mrf.mxu0
  %v2289 = vadd.f32 0.0, %v2288
  %v2290 = vpop.f32.mrf.mxu0
  %2291 = vmatprep.mubr.f32.mxu0 %v2182
  %2292 = vmatmul.mubr.f32.gmra.mxu0 %v2181
  %v2293 = vpop.f32.mrf.mxu0
  %v2294 = vadd.f32 0.0, %v2293
  %v2295 = vpop.f32.mrf.mxu0
  %2296 = vmatprep.mubr.f32.mxu0 %v2184
  %2297 = vmatmul.mubr.f32.gmra.mxu0 %v2183
  %v2298 = vpop.f32.mrf.mxu0
  %v2299 = vadd.f32 0.0, %v2298
  %v2300 = vpop.f32.mrf.mxu0
  %2301 = vdwg.mxu0
  %v2302 = vadd.f32 %v505, %v2284
  %v2303 = vadd.f32 %v510, %v2289
  %v2304 = vadd.f32 %v515, %v2294
  %v2305 = vadd.f32 %v520, %v2299
  %2306 = vst [vmem:[%s13] sm:$0xff] %v2302
  %2307 = vst [vmem:[%s13 + $0x8] sm:$0xff] %v2303
  %2308 = vst [vmem:[%s13 + $0x10] sm:$0xff] %v2304
  %2309 = vst [vmem:[%s13 + $0x18] sm:$0xff] %v2305
  // Predicated region
  $region54: #{lgff_forward.1} parent=0 // pred_check
    _
  $region55: #{lgff_forward.1} parent=0 // pred_check_branch
    %2311 = sbr.rel (0) target = $region57
  $region56: #{lgff_forward.1} parent=0 // pred_region
    _
  $region57: #{lgff_forward.1} parent=0 // pred_fallthru
    _
  // Predicated region
  $region58: #{lgff_forward.1} parent=0 // pred_check
    _
  $region59: #{lgff_forward.1} parent=0 // pred_check_branch
    %2313 = sbr.rel (0) target = $region61
  $region60: #{lgff_forward.1} parent=0 // pred_region
    _
  $region61: #{lgff_forward.1} parent=0 // pred_fallthru
    _

</llo_original>
